<compile_context>
chip_gen: v6e
topology: v6e:2x2x1
jax: 0.10.0
libtpu: 0.0.40
codegen_flags: <defaults>
</compile_context>

<pallas_src>
import functools

import jax
import jax.numpy as jnp
from jax.experimental import pallas as pl
from jax.experimental.pallas import tpu as pltpu

LANE = 128


# ---------------------------------------------------------------------------
# Kernels
# ---------------------------------------------------------------------------

def _project_kernel(x_ref, w_ref, out_ref):
    """Z1[rows] = X[rows] @ W1   (bf16 x bf16 -> f32 accumulation -> bf16)."""
    out_ref[...] = jnp.dot(
        x_ref[...], w_ref[...], preferred_element_type=jnp.float32
    ).astype(out_ref.dtype)


def _gcn_mid_layer_kernel(adj_ref, z_ref, b_ref, wn_ref, out_ref, acc_ref, *, tk):
    """out[rows] = relu(A[rows, :] @ Z + b) @ W_next, accumulated over K blocks.

    Z is VMEM-resident (full array); the k-th (tk, d) chunk is sliced in-kernel.
    """
    k = pl.program_id(1)

    @pl.when(k == 0)
    def _init():
        acc_ref[...] = jnp.zeros_like(acc_ref)

    start = pl.multiple_of(k * tk, tk)
    acc_ref[...] += jnp.dot(
        adj_ref[...], z_ref[pl.ds(start, tk), :],
        preferred_element_type=jnp.float32,
    )

    @pl.when(k == pl.num_programs(1) - 1)
    def _finalize():
        h = jnp.maximum(acc_ref[...] + b_ref[...], 0.0)
        # TODO(synk): training-mode dropout (stochastic masking) omitted; identity at eval.
        out_ref[...] = jnp.dot(
            h.astype(jnp.bfloat16), wn_ref[...],
            preferred_element_type=jnp.float32,
        ).astype(out_ref.dtype)


def _gcn_final_layer_kernel(adj_ref, z_ref, b_ref, out_ref, acc_ref, *, tk, out_dim):
    """out[rows] = softmax(A[rows, :] @ Z + b, axis=1) over the first out_dim cols."""
    k = pl.program_id(1)

    @pl.when(k == 0)
    def _init():
        acc_ref[...] = jnp.zeros_like(acc_ref)

    start = pl.multiple_of(k * tk, tk)
    acc_ref[...] += jnp.dot(
        adj_ref[...], z_ref[pl.ds(start, tk), :],
        preferred_element_type=jnp.float32,
    )

    @pl.when(k == pl.num_programs(1) - 1)
    def _finalize():
        logits = acc_ref[...] + b_ref[...]
        # Mask the zero-padded logit columns so they contribute nothing.
        col = jax.lax.broadcasted_iota(jnp.int32, logits.shape, 1)
        logits = jnp.where(col < out_dim, logits, jnp.float32(-1e30))
        m = jnp.max(logits, axis=1, keepdims=True)
        e = jnp.exp(logits - m)
        denom = jnp.sum(e, axis=1, keepdims=True)
        # Exact divide: output rows must sum to 1 (approx reciprocal does not).
        out_ref[...] = (e / denom).astype(out_ref.dtype)


# ---------------------------------------------------------------------------
# pallas_call wrappers
# ---------------------------------------------------------------------------

def _round_up(x, m):
    return (x + m - 1) // m * m


def _pick_tiles(n):
    """Pad N to a tile-friendly multiple and choose (tm, tk)."""
    n_pad = _round_up(n, 256)
    # Row (output) tile: as large as 512, but keep >= 2 row programs so the
    # "parallel" axis actually shards across v7x's two TensorCores.
    tm = 128
    for cand in (256, 512):
        if n_pad % cand == 0 and n_pad // cand >= 2:
            tm = cand
    # Contraction tile over A's columns: biggest divisor of n_pad up to 2048.
    tk = 128
    for cand in (256, 512, 1024, 2048):
        if n_pad % cand == 0:
            tk = cand
    return n_pad, tm, tk


def _project(x_b, w1_b, tm):
    n_pad, in_dim = x_b.shape
    d1 = w1_b.shape[1]
    return pl.pallas_call(
        _project_kernel,
        out_shape=jax.ShapeDtypeStruct((n_pad, d1), jnp.bfloat16),
        grid=(n_pad // tm,),
        in_specs=[
            pl.BlockSpec((tm, in_dim), lambda i: (i, 0)),
            pl.BlockSpec((in_dim, d1), lambda i: (0, 0)),
        ],
        out_specs=pl.BlockSpec((tm, d1), lambda i: (i, 0)),
        compiler_params=pltpu.CompilerParams(dimension_semantics=("parallel",)),
    )(x_b, w1_b)


def _gcn_layer(adj_b, z, b_row, w_next, tm, tk):
    n_pad = adj_b.shape[0]
    d_in = z.shape[1]
    d_out = w_next.shape[1]
    kernel = functools.partial(_gcn_mid_layer_kernel, tk=tk)
    return pl.pallas_call(
        kernel,
        out_shape=jax.ShapeDtypeStruct((n_pad, d_out), jnp.bfloat16),
        grid=(n_pad // tm, n_pad // tk),
        in_specs=[
            pl.BlockSpec((tm, tk), lambda i, k: (i, k)),
            # Z is VMEM-resident (constant block index -> fetched once).
            pl.BlockSpec((n_pad, d_in), lambda i, k: (0, 0)),
            pl.BlockSpec((1, d_in), lambda i, k: (0, 0)),
            pl.BlockSpec((d_in, d_out), lambda i, k: (0, 0)),
        ],
        out_specs=pl.BlockSpec((tm, d_out), lambda i, k: (i, 0)),
        scratch_shapes=[pltpu.VMEM((tm, d_in), jnp.float32)],
        compiler_params=pltpu.CompilerParams(
            dimension_semantics=("parallel", "arbitrary")),
    )(adj_b, z, b_row, w_next)


def _gcn_final(adj_b, z, b_row, tm, tk, out_dim):
    n_pad = adj_b.shape[0]
    d_in = z.shape[1]
    kernel = functools.partial(_gcn_final_layer_kernel, tk=tk, out_dim=out_dim)
    return pl.pallas_call(
        kernel,
        out_shape=jax.ShapeDtypeStruct((n_pad, d_in), jnp.float32),
        grid=(n_pad // tm, n_pad // tk),
        in_specs=[
            pl.BlockSpec((tm, tk), lambda i, k: (i, k)),
            pl.BlockSpec((n_pad, d_in), lambda i, k: (0, 0)),
            pl.BlockSpec((1, d_in), lambda i, k: (0, 0)),
        ],
        out_specs=pl.BlockSpec((tm, d_in), lambda i, k: (i, 0)),
        scratch_shapes=[pltpu.VMEM((tm, d_in), jnp.float32)],
        compiler_params=pltpu.CompilerParams(
            dimension_semantics=("parallel", "arbitrary")),
    )(adj_b, z, b_row)


@jax.jit
def textgcn_forward(adj, features, w1, b1, w2, b2, w3, b3):
    n = adj.shape[0]
    out_dim = w3.shape[1]
    n_pad, tm, tk = _pick_tiles(n)

    # Cast to bf16 FIRST, then pad (avoids materializing an f32 padded N^2 copy).
    adj_b = jnp.pad(adj.astype(jnp.bfloat16), ((0, n_pad - n), (0, n_pad - n)))
    x_b = jnp.pad(features.astype(jnp.bfloat16), ((0, n_pad - n), (0, 0)))

    # Pad hidden/output widths up to 128 lanes (zeros) for lane-dense tiles.
    d1 = _round_up(w1.shape[1], LANE)
    d2 = _round_up(w2.shape[1], LANE)
    d3 = _round_up(w3.shape[1], LANE)

    w1_b = jnp.pad(w1.astype(jnp.bfloat16), ((0, 0), (0, d1 - w1.shape[1])))
    w2_b = jnp.pad(w2.astype(jnp.bfloat16),
                   ((0, d1 - w2.shape[0]), (0, d2 - w2.shape[1])))
    w3_b = jnp.pad(w3.astype(jnp.bfloat16),
                   ((0, d2 - w3.shape[0]), (0, d3 - w3.shape[1])))

    b1r = jnp.pad(b1.astype(jnp.float32), (0, d1 - b1.shape[0])).reshape(1, d1)
    b2r = jnp.pad(b2.astype(jnp.float32), (0, d2 - b2.shape[0])).reshape(1, d2)
    b3r = jnp.pad(b3.astype(jnp.float32), (0, d3 - b3.shape[0])).reshape(1, d3)

    # Z1 = X @ W1 (computed exactly once, bf16 out).
    z1 = _project(x_b, w1_b, tm)
    # Z2 = relu(A @ Z1 + b1) @ W2
    z2 = _gcn_layer(adj_b, z1, b1r, w2_b, tm, tk)
    # Z3 = relu(A @ Z2 + b2) @ W3
    z3 = _gcn_layer(adj_b, z2, b2r, w3_b, tm, tk)
    # OUT = softmax(A @ Z3 + b3, axis=1)
    out = _gcn_final(adj_b, z3, b3r, tm, tk, out_dim)
    return out[:n, :out_dim]


# ---------------------------------------------------------------------------
# Reference / test harness
# ---------------------------------------------------------------------------

def xavier_uniform(key, shape, dtype=jnp.float32):
    fan_in, fan_out = shape
    limit = (6.0 / (fan_in + fan_out)) ** 0.5
    return jax.random.uniform(key, shape, dtype=dtype, minval=-limit, maxval=limit)


def reference_forward(adj, features, w1, b1, w2, b2, w3, b3):
    h = jnp.dot(jnp.dot(adj, features), w1) + b1
    h = jnp.maximum(h, 0.0)
    h = jnp.dot(jnp.dot(adj, h), w2) + b2
    h = jnp.maximum(h, 0.0)
    h = jnp.dot(jnp.dot(adj, h), w3) + b3
    return jax.nn.softmax(h, axis=1)


if __name__ == "__main__":
    # Module-consistent small shapes: N nodes, 768 input feature dim (fixed by
    # weight1), hidden_dim1=64, hidden_dim2=32, output_dim=16.
    N = 256
    IN_DIM = 768
    H1, H2, OUT = 64, 32, 16

    key = jax.random.PRNGKey(0)
    k_adj, k_feat, k_w1, k_w2, k_w3 = jax.random.split(key, 5)

    # Symmetric row-normalized adjacency-like matrix (dense).
    a = jax.random.uniform(k_adj, (N, N), dtype=jnp.float32)
    a = 0.5 * (a + a.T) + jnp.eye(N, dtype=jnp.float32)
    adj = a / jnp.sum(a, axis=1, keepdims=True)

    features = jax.random.normal(k_feat, (N, IN_DIM), dtype=jnp.float32)

    w1 = xavier_uniform(k_w1, (IN_DIM, H1))
    b1 = jnp.zeros((H1,), jnp.float32)
    w2 = xavier_uniform(k_w2, (H1, H2))
    b2 = jnp.zeros((H2,), jnp.float32)
    w3 = xavier_uniform(k_w3, (H2, OUT))
    b3 = jnp.zeros((OUT,), jnp.float32)

    out = textgcn_forward(adj, features, w1, b1, w2, b2, w3, b3)
    out = jax.block_until_ready(out)

    ref = reference_forward(adj, features, w1, b1, w2, b2, w3, b3)
    assert out.shape == (N, OUT)
    max_err = float(jnp.max(jnp.abs(out - ref)))
    # bf16 adjacency/features/Z (f32 accumulation) -> slightly looser tolerance
    # than the pure-f32 reference.
    assert max_err < 2e-2, f"mismatch vs reference: max abs err = {max_err}"
    assert jnp.allclose(jnp.sum(out, axis=1), 1.0, atol=1e-3), "softmax rows != 1"

    print("KERNEL_OK")
</pallas_src>

<mosaic_0001>
module attributes {stable_mosaic.version = 11 : i64} {
  func.func @_project_kernel(%arg0: i32, %arg1: memref<128x768xbf16, #tpu.memory_space<vmem>>, %arg2: memref<768x128xbf16, #tpu.memory_space<vmem>>, %arg3: memref<128x128xbf16, #tpu.memory_space<vmem>>) attributes {dimension_semantics = [#tpu.dimension_semantics<parallel>], iteration_bounds = array<i64: 2>, scalar_prefetch = 0 : i64, scratch_operands = 0 : i64, tpu.core_type = #tpu.core_type<tc>, window_params = [{transform_indices = @transform_0, window_bounds = array<i64: 128, 768>}, {pipeline_mode = #tpu.pipeline_mode<synchronous>, transform_indices = @transform_1, window_bounds = array<i64: 768, 128>}, {transform_indices = @transform_2, window_bounds = array<i64: 128, 128>}]} {
    %c0 = arith.constant 0 : index
    %c0_0 = arith.constant 0 : index
    %0 = vector.load %arg1[%c0, %c0_0] : memref<128x768xbf16, #tpu.memory_space<vmem>>, vector<128x768xbf16>
    %c0_1 = arith.constant 0 : index
    %c0_2 = arith.constant 0 : index
    %1 = vector.load %arg2[%c0_1, %c0_2] : memref<768x128xbf16, #tpu.memory_space<vmem>>, vector<768x128xbf16>
    %cst = arith.constant dense<0.000000e+00> : vector<128x128xf32>
    %2 = tpu.matmul %0, %1, %cst {dimension_numbers = #tpu.dot_dimension_numbers<[1], [0], [0], [1], [0, 0, 1, 1], [], []>} : vector<128x768xbf16>, vector<768x128xbf16>, vector<128x128xf32> -> vector<128x128xf32>
    %3 = arith.truncf %2 : vector<128x128xf32> to vector<128x128xbf16>
    %c0_3 = arith.constant 0 : index
    %c0_4 = arith.constant 0 : index
    %4 = vector.load %arg3[%c0_3, %c0_4] : memref<128x128xbf16, #tpu.memory_space<vmem>>, vector<128x128xbf16>
    tpu.vector_store %arg3[%c0_3, %c0_4], %3 {strides = array<i32>} : memref<128x128xbf16, #tpu.memory_space<vmem>>, vector<128x128xbf16>,
    return
  }
  func.func @transform_0(%arg0: i32) -> (i32, i32) {
    %c0_i32 = arith.constant 0 : i32
    %c0_i32_0 = arith.constant 0 : i32
    return %arg0, %c0_i32 : i32, i32
  }
  func.func @transform_1(%arg0: i32) -> (i32, i32) {
    %c0_i32 = arith.constant 0 : i32
    %c0_i32_0 = arith.constant 0 : i32
    %c0_i32_1 = arith.constant 0 : i32
    return %c0_i32, %c0_i32_0 : i32, i32
  }
  func.func @transform_2(%arg0: i32) -> (i32, i32) {
    %c0_i32 = arith.constant 0 : i32
    %c0_i32_0 = arith.constant 0 : i32
    return %arg0, %c0_i32 : i32, i32
  }
}

module attributes {stable_mosaic.version = 11 : i64} {
  func.func @_gcn_mid_layer_kernel(%arg0: i32, %arg1: i32, %arg2: memref<128x256xbf16, #tpu.memory_space<vmem>>, %arg3: memref<256x128xbf16, #tpu.memory_space<vmem>>, %arg4: memref<1x128xf32, #tpu.memory_space<vmem>>, %arg5: memref<128x128xbf16, #tpu.memory_space<vmem>>, %arg6: memref<128x128xbf16, #tpu.memory_space<vmem>>, %arg7: memref<128x128xf32, #tpu.memory_space<vmem>>) attributes {dimension_semantics = [#tpu.dimension_semantics<parallel>, #tpu.dimension_semantics<arbitrary>], iteration_bounds = array<i64: 2, 1>, scalar_prefetch = 0 : i64, scratch_operands = 1 : i64, tpu.core_type = #tpu.core_type<tc>, window_params = [{transform_indices = @transform_0, window_bounds = array<i64: 128, 256>}, {pipeline_mode = #tpu.pipeline_mode<synchronous>, transform_indices = @transform_1, window_bounds = array<i64: 256, 128>}, {pipeline_mode = #tpu.pipeline_mode<synchronous>, transform_indices = @transform_2, window_bounds = array<i64: 1, 128>}, {pipeline_mode = #tpu.pipeline_mode<synchronous>, transform_indices = @transform_3, window_bounds = array<i64: 128, 128>}, {transform_indices = @transform_4, window_bounds = array<i64: 128, 128>}]} {
    %c0_i32 = arith.constant 0 : i32
    %0 = arith.cmpi eq, %arg1, %c0_i32 : i32
    %1 = arith.extui %0 : i1 to i32
    %c0_i32_0 = arith.constant 0 : i32
    %2 = arith.cmpi ne, %1, %c0_i32_0 : i32
    scf.if %2 {
      %cst_9 = arith.constant 0.000000e+00 : f32
      %15 = vector.broadcast %cst_9 : f32 to vector<128x128xf32>
      %c0_10 = arith.constant 0 : index
      %c0_11 = arith.constant 0 : index
      %16 = vector.load %arg7[%c0_10, %c0_11] : memref<128x128xf32, #tpu.memory_space<vmem>>, vector<128x128xf32>
      tpu.vector_store %arg7[%c0_10, %c0_11], %15 {strides = array<i32>} : memref<128x128xf32, #tpu.memory_space<vmem>>, vector<128x128xf32>,
    } else {
    }
    %c256_i32 = arith.constant 256 : i32
    %3 = arith.muli %arg1, %c256_i32 : i32
    %4 = tpu.assume_multiple %3, 256 : i32
    %c0 = arith.constant 0 : index
    %c0_1 = arith.constant 0 : index
    %5 = vector.load %arg7[%c0, %c0_1] : memref<128x128xf32, #tpu.memory_space<vmem>>, vector<128x128xf32>
    %c0_2 = arith.constant 0 : index
    %c0_3 = arith.constant 0 : index
    %6 = vector.load %arg2[%c0_2, %c0_3] : memref<128x256xbf16, #tpu.memory_space<vmem>>, vector<128x256xbf16>
    %7 = arith.index_cast %4 : i32 to index
    %c0_4 = arith.constant 0 : index
    %8 = vector.load %arg3[%7, %c0_4] : memref<256x128xbf16, #tpu.memory_space<vmem>>, vector<256x128xbf16>
    %cst = arith.constant dense<0.000000e+00> : vector<128x128xf32>
    %9 = tpu.matmul %6, %8, %cst {dimension_numbers = #tpu.dot_dimension_numbers<[1], [0], [0], [1], [0, 0, 1, 1], [], []>} : vector<128x256xbf16>, vector<256x128xbf16>, vector<128x128xf32> -> vector<128x128xf32>
    %10 = arith.addf %5, %9 : vector<128x128xf32>
    %c0_5 = arith.constant 0 : index
    %c0_6 = arith.constant 0 : index
    %11 = vector.load %arg7[%c0_5, %c0_6] : memref<128x128xf32, #tpu.memory_space<vmem>>, vector<128x128xf32>
    tpu.vector_store %arg7[%c0_5, %c0_6], %10 {strides = array<i32>} : memref<128x128xf32, #tpu.memory_space<vmem>>, vector<128x128xf32>,
    %c0_i32_7 = arith.constant 0 : i32
    %12 = arith.cmpi eq, %arg1, %c0_i32_7 : i32
    %13 = arith.extui %12 : i1 to i32
    %c0_i32_8 = arith.constant 0 : i32
    %14 = arith.cmpi ne, %13, %c0_i32_8 : i32
    scf.if %14 {
      %c0_9 = arith.constant 0 : index
      %c0_10 = arith.constant 0 : index
      %15 = vector.load %arg7[%c0_9, %c0_10] : memref<128x128xf32, #tpu.memory_space<vmem>>, vector<128x128xf32>
      %c0_11 = arith.constant 0 : index
      %c0_12 = arith.constant 0 : index
      %16 = vector.load %arg4[%c0_11, %c0_12] : memref<1x128xf32, #tpu.memory_space<vmem>>, vector<1x128xf32>
      %17 = vector.broadcast %16 : vector<1x128xf32> to vector<128x128xf32>
      %18 = arith.addf %15, %17 : vector<128x128xf32>
      %cst_13 = arith.constant 0.000000e+00 : f32
      %19 = vector.broadcast %cst_13 : f32 to vector<128x128xf32>
      %20 = arith.maximumf %18, %19 : vector<128x128xf32>
      %21 = arith.truncf %20 : vector<128x128xf32> to vector<128x128xbf16>
      %c0_14 = arith.constant 0 : index
      %c0_15 = arith.constant 0 : index
      %22 = vector.load %arg5[%c0_14, %c0_15] : memref<128x128xbf16, #tpu.memory_space<vmem>>, vector<128x128xbf16>
      %cst_16 = arith.constant dense<0.000000e+00> : vector<128x128xf32>
      %23 = tpu.matmul %21, %22, %cst_16 {dimension_numbers = #tpu.dot_dimension_numbers<[1], [0], [0], [1], [0, 0, 1, 1], [], []>} : vector<128x128xbf16>, vector<128x128xbf16>, vector<128x128xf32> -> vector<128x128xf32>
      %24 = arith.truncf %23 : vector<128x128xf32> to vector<128x128xbf16>
      %c0_17 = arith.constant 0 : index
      %c0_18 = arith.constant 0 : index
      %25 = vector.load %arg6[%c0_17, %c0_18] : memref<128x128xbf16, #tpu.memory_space<vmem>>, vector<128x128xbf16>
      tpu.vector_store %arg6[%c0_17, %c0_18], %24 {strides = array<i32>} : memref<128x128xbf16, #tpu.memory_space<vmem>>, vector<128x128xbf16>,
    } else {
    }
    return
  }
  func.func @transform_0(%arg0: i32, %arg1: i32) -> (i32, i32) {
    %c0_i32 = arith.constant 0 : i32
    return %arg0, %arg1 : i32, i32
  }
  func.func @transform_1(%arg0: i32, %arg1: i32) -> (i32, i32) {
    %c0_i32 = arith.constant 0 : i32
    %c0_i32_0 = arith.constant 0 : i32
    %c0_i32_1 = arith.constant 0 : i32
    return %c0_i32, %c0_i32_0 : i32, i32
  }
  func.func @transform_2(%arg0: i32, %arg1: i32) -> (i32, i32) {
    %c0_i32 = arith.constant 0 : i32
    %c0_i32_0 = arith.constant 0 : i32
    %c0_i32_1 = arith.constant 0 : i32
    return %c0_i32, %c0_i32_0 : i32, i32
  }
  func.func @transform_3(%arg0: i32, %arg1: i32) -> (i32, i32) {
    %c0_i32 = arith.constant 0 : i32
    %c0_i32_0 = arith.constant 0 : i32
    %c0_i32_1 = arith.constant 0 : i32
    return %c0_i32, %c0_i32_0 : i32, i32
  }
  func.func @transform_4(%arg0: i32, %arg1: i32) -> (i32, i32) {
    %c0_i32 = arith.constant 0 : i32
    %c0_i32_0 = arith.constant 0 : i32
    return %arg0, %c0_i32 : i32, i32
  }
}

module attributes {stable_mosaic.version = 11 : i64} {
  func.func @_gcn_final_layer_kernel(%arg0: i32, %arg1: i32, %arg2: memref<128x256xbf16, #tpu.memory_space<vmem>>, %arg3: memref<256x128xbf16, #tpu.memory_space<vmem>>, %arg4: memref<1x128xf32, #tpu.memory_space<vmem>>, %arg5: memref<128x128xf32, #tpu.memory_space<vmem>>, %arg6: memref<128x128xf32, #tpu.memory_space<vmem>>) attributes {dimension_semantics = [#tpu.dimension_semantics<parallel>, #tpu.dimension_semantics<arbitrary>], iteration_bounds = array<i64: 2, 1>, scalar_prefetch = 0 : i64, scratch_operands = 1 : i64, tpu.core_type = #tpu.core_type<tc>, window_params = [{transform_indices = @transform_0, window_bounds = array<i64: 128, 256>}, {pipeline_mode = #tpu.pipeline_mode<synchronous>, transform_indices = @transform_1, window_bounds = array<i64: 256, 128>}, {pipeline_mode = #tpu.pipeline_mode<synchronous>, transform_indices = @transform_2, window_bounds = array<i64: 1, 128>}, {transform_indices = @transform_3, window_bounds = array<i64: 128, 128>}]} {
    %c0_i32 = arith.constant 0 : i32
    %0 = arith.cmpi eq, %arg1, %c0_i32 : i32
    %1 = arith.extui %0 : i1 to i32
    %c0_i32_0 = arith.constant 0 : i32
    %2 = arith.cmpi ne, %1, %c0_i32_0 : i32
    scf.if %2 {
      %cst_9 = arith.constant 0.000000e+00 : f32
      %15 = vector.broadcast %cst_9 : f32 to vector<128x128xf32>
      %c0_10 = arith.constant 0 : index
      %c0_11 = arith.constant 0 : index
      %16 = vector.load %arg6[%c0_10, %c0_11] : memref<128x128xf32, #tpu.memory_space<vmem>>, vector<128x128xf32>
      tpu.vector_store %arg6[%c0_10, %c0_11], %15 {strides = array<i32>} : memref<128x128xf32, #tpu.memory_space<vmem>>, vector<128x128xf32>,
    } else {
    }
    %c256_i32 = arith.constant 256 : i32
    %3 = arith.muli %arg1, %c256_i32 : i32
    %4 = tpu.assume_multiple %3, 256 : i32
    %c0 = arith.constant 0 : index
    %c0_1 = arith.constant 0 : index
    %5 = vector.load %arg6[%c0, %c0_1] : memref<128x128xf32, #tpu.memory_space<vmem>>, vector<128x128xf32>
    %c0_2 = arith.constant 0 : index
    %c0_3 = arith.constant 0 : index
    %6 = vector.load %arg2[%c0_2, %c0_3] : memref<128x256xbf16, #tpu.memory_space<vmem>>, vector<128x256xbf16>
    %7 = arith.index_cast %4 : i32 to index
    %c0_4 = arith.constant 0 : index
    %8 = vector.load %arg3[%7, %c0_4] : memref<256x128xbf16, #tpu.memory_space<vmem>>, vector<256x128xbf16>
    %cst = arith.constant dense<0.000000e+00> : vector<128x128xf32>
    %9 = tpu.matmul %6, %8, %cst {dimension_numbers = #tpu.dot_dimension_numbers<[1], [0], [0], [1], [0, 0, 1, 1], [], []>} : vector<128x256xbf16>, vector<256x128xbf16>, vector<128x128xf32> -> vector<128x128xf32>
    %10 = arith.addf %5, %9 : vector<128x128xf32>
    %c0_5 = arith.constant 0 : index
    %c0_6 = arith.constant 0 : index
    %11 = vector.load %arg6[%c0_5, %c0_6] : memref<128x128xf32, #tpu.memory_space<vmem>>, vector<128x128xf32>
    tpu.vector_store %arg6[%c0_5, %c0_6], %10 {strides = array<i32>} : memref<128x128xf32, #tpu.memory_space<vmem>>, vector<128x128xf32>,
    %c0_i32_7 = arith.constant 0 : i32
    %12 = arith.cmpi eq, %arg1, %c0_i32_7 : i32
    %13 = arith.extui %12 : i1 to i32
    %c0_i32_8 = arith.constant 0 : i32
    %14 = arith.cmpi ne, %13, %c0_i32_8 : i32
    scf.if %14 {
      %c0_9 = arith.constant 0 : index
      %c0_10 = arith.constant 0 : index
      %15 = vector.load %arg6[%c0_9, %c0_10] : memref<128x128xf32, #tpu.memory_space<vmem>>, vector<128x128xf32>
      %c0_11 = arith.constant 0 : index
      %c0_12 = arith.constant 0 : index
      %16 = vector.load %arg4[%c0_11, %c0_12] : memref<1x128xf32, #tpu.memory_space<vmem>>, vector<1x128xf32>
      %17 = vector.broadcast %16 : vector<1x128xf32> to vector<128x128xf32>
      %18 = arith.addf %15, %17 : vector<128x128xf32>
      %19 = tpu.iota {dimensions = array<i32: 1>} : vector<128x128xi32>
      %c16_i32 = arith.constant 16 : i32
      %20 = vector.broadcast %c16_i32 : i32 to vector<128x128xi32>
      %21 = arith.cmpi slt, %19, %20 : vector<128x128xi32>
      %cst_13 = arith.constant -1.000000e+30 : f32
      %22 = vector.broadcast %cst_13 : f32 to vector<128x128xf32>
      %23 = arith.select %21, %18, %22 : vector<128x128xi1>, vector<128x128xf32>
      %cst_14 = arith.constant dense<0xFF800000> : vector<128xf32>
      %24 = vector.multi_reduction <maximumf>, %23, %cst_14 [1] : vector<128x128xf32> to vector<128xf32>
      %25 = vector.shape_cast %24 : vector<128xf32> to vector<128x1xf32>
      %26 = vector.broadcast %25 : vector<128x1xf32> to vector<128x128xf32>
      %27 = arith.subf %23, %26 : vector<128x128xf32>
      %28 = math.exp %27 : vector<128x128xf32>
      %cst_15 = arith.constant dense<0.000000e+00> : vector<128xf32>
      %29 = vector.multi_reduction <add>, %28, %cst_15 [1] : vector<128x128xf32> to vector<128xf32>
      %30 = vector.shape_cast %29 : vector<128xf32> to vector<128x1xf32>
      %31 = vector.broadcast %30 : vector<128x1xf32> to vector<128x128xf32>
      %32 = arith.divf %28, %31 : vector<128x128xf32>
      %c0_16 = arith.constant 0 : index
      %c0_17 = arith.constant 0 : index
      %33 = vector.load %arg5[%c0_16, %c0_17] : memref<128x128xf32, #tpu.memory_space<vmem>>, vector<128x128xf32>
      tpu.vector_store %arg5[%c0_16, %c0_17], %32 {strides = array<i32>} : memref<128x128xf32, #tpu.memory_space<vmem>>, vector<128x128xf32>,
    } else {
    }
    return
  }
  func.func @transform_0(%arg0: i32, %arg1: i32) -> (i32, i32) {
    %c0_i32 = arith.constant 0 : i32
    return %arg0, %arg1 : i32, i32
  }
  func.func @transform_1(%arg0: i32, %arg1: i32) -> (i32, i32) {
    %c0_i32 = arith.constant 0 : i32
    %c0_i32_0 = arith.constant 0 : i32
    %c0_i32_1 = arith.constant 0 : i32
    return %c0_i32, %c0_i32_0 : i32, i32
  }
  func.func @transform_2(%arg0: i32, %arg1: i32) -> (i32, i32) {
    %c0_i32 = arith.constant 0 : i32
    %c0_i32_0 = arith.constant 0 : i32
    %c0_i32_1 = arith.constant 0 : i32
    return %c0_i32, %c0_i32_0 : i32, i32
  }
  func.func @transform_3(%arg0: i32, %arg1: i32) -> (i32, i32) {
    %c0_i32 = arith.constant 0 : i32
    %c0_i32_0 = arith.constant 0 : i32
    return %arg0, %c0_i32 : i32, i32
  }
}

</mosaic_0001>

<llo_original>
// kernel: textgcn_forward.7
$region0: #{textgcn_forward.7}
  #allocation0 [shape = 'u32[]', space=smem, size = 0x4, offset = 0x4, fixed_abs, tag = 'smem constant byte address 0x4 - core index']
  #allocation1 [shape = 'u32[144,128]{1,0:T(1,128)}', space=vmem, size = 0x12000, scoped, tag = 'internal scratch']
  #allocation2 [shape = 'f32[128,128]{1,0:T(8,128)}', space=vmem, size = 0x10000, scoped, tag = 'scratch operand']
  %s0 = inlined_call_operand.vmem [shape: bf16[256,256], index: 0, kind: input, shape index: {}]
  %s1 = inlined_call_operand.vmem [shape: bf16[256,128], index: 1, kind: input, shape index: {}]
  %s2 = inlined_call_operand.vmem [shape: f32[1,128], index: 2, kind: input, shape index: {}]
  %s3 = inlined_call_operand.vmem [shape: f32[256,128], index: 3, kind: output, shape index: {}]
  %s4 = sld [smem:[#allocation0]]
  $region53: #{textgcn_forward.7} parent=0
    _
  %s6 = ssub.s32 1, %s4
  %s7 = scalar_select 0, %s6, %s4
  loop: start=0, step=1, limit=4
  $region2: #{textgcn_forward.7} parent=0 // loop_pre_header
    _
  $region3: #{textgcn_forward.7} parent=0 // loop_header
    %s9 = sphi 0, %s13
    %p10 = scmp.ge.s32.totalorder %s9, 4
    %s16 = sphi 0, %s28
    %s17 = sphi 0, %s24
    %s18 = sphi 0, %s16
    %s19 = sphi 0, %s17
    %s20 = sphi 0, %s18
    %s21 = sphi 0, %s19
    %s33 = sphi 0, %s35
    %s36 = sphi 0, %s33
    %s37 = sphi 0, %s36
    %s53 = sphi 0, %s37
    %s57 = sphi 0, %s57
    %s59 = sphi 0, %s57
    %s60 = sphi 0, %s59
    %s74 = sphi 0, %s60
    %s78 = sphi 0, %s78
    %s80 = sphi 0, %s78
    %s81 = sphi 0, %s80
    %s95 = sphi 0, %s81
    %s101 = sphi 0, %s103
    %s104 = sphi 0, %s101
    %s105 = sphi 0, %s104
    %s121 = sphi 0, %s105
  $region4: #{textgcn_forward.7} parent=0 // loop_header_branch
    %12 = sbr.rel (%p10) target = $region8
  $region5: #{textgcn_forward.7} parent=0 // loop_body
    %s14 = ssub.s32 %s9, 1
    %s15 = ssub.s32 %s9, 2
    %s22 = sadd.s32 1, %s17
    %p23 = scmp.ge.s32.totalorder %s22, 1
    %s24 = scalar_select %p23, 0, %s22
    %s25 = sadd.s32 1, %s16
    %s26 = scalar_select %p23, %s25, %s16
    %p27 = scmp.ge.s32.totalorder %s26, 2
    %s28 = scalar_select %p27, 0, %s26
    %s29 = ssub.s32 %s16, %s28
    %s30 = ssub.s32 %s17, %s24
    %s31 = sor.u32 %s29, %s30
    %p32 = scmp.eq.s32.totalorder %s31, 0
    %s34 = sadd.s32 %s33, 1
    %s35 = scalar_select %p32, %s33, %s34
    %p38 = pneg %p32
    %p39 = scmp.eq.s32.totalorder %s9, 1
    %p40 = por %p38, %p39
    %p41 = scmp.ne.s32.totalorder %s33, %s36
    %p42 = scmp.eq.s32.totalorder %s9, 0
    %p43 = por %p41, %p42
    %p44 = scmp.ne.s32.totalorder %s33, %s36
    %p45 = scmp.eq.s32.totalorder %s14, 1
    %p46 = por %p44, %p45
    %p47 = scmp.ne.s32.totalorder %s36, %s37
    %p48 = scmp.eq.s32.totalorder %s14, 0
    %p49 = por %p47, %p48
    %p50 = scmp.ne.s32.totalorder %s36, %s37
    %p51 = scmp.eq.s32.totalorder %s15, 1
    %p52 = por %p50, %p51
    %p54 = scmp.ne.s32.totalorder %s37, %s53
    %p55 = scmp.eq.s32.totalorder %s15, 0
    %p56 = por %p54, %p55
    %s58 = sadd.s32 %s57, 1
    %p61 = scmp.eq.s32.totalorder %s9, 1
    %p62 = scmp.ne.s32.totalorder %s57, %s59
    %p63 = scmp.eq.s32.totalorder %s9, 0
    %p64 = por %p62, %p63
    %p65 = scmp.ne.s32.totalorder %s57, %s59
    %p66 = scmp.eq.s32.totalorder %s14, 1
    %p67 = por %p65, %p66
    %p68 = scmp.ne.s32.totalorder %s59, %s60
    %p69 = scmp.eq.s32.totalorder %s14, 0
    %p70 = por %p68, %p69
    %p71 = scmp.ne.s32.totalorder %s59, %s60
    %p72 = scmp.eq.s32.totalorder %s15, 1
    %p73 = por %p71, %p72
    %p75 = scmp.ne.s32.totalorder %s60, %s74
    %p76 = scmp.eq.s32.totalorder %s15, 0
    %p77 = por %p75, %p76
    %s79 = sadd.s32 %s78, 1
    %p82 = scmp.eq.s32.totalorder %s9, 1
    %p83 = scmp.ne.s32.totalorder %s78, %s80
    %p84 = scmp.eq.s32.totalorder %s9, 0
    %p85 = por %p83, %p84
    %p86 = scmp.ne.s32.totalorder %s78, %s80
    %p87 = scmp.eq.s32.totalorder %s14, 1
    %p88 = por %p86, %p87
    %p89 = scmp.ne.s32.totalorder %s80, %s81
    %p90 = scmp.eq.s32.totalorder %s14, 0
    %p91 = por %p89, %p90
    %p92 = scmp.ne.s32.totalorder %s80, %s81
    %p93 = scmp.eq.s32.totalorder %s15, 1
    %p94 = por %p92, %p93
    %p96 = scmp.ne.s32.totalorder %s81, %s95
    %p97 = scmp.eq.s32.totalorder %s15, 0
    %p98 = por %p96, %p97
    %s99 = ssub.s32 %s16, %s28
    %p100 = scmp.eq.s32.totalorder %s99, 0
    %s102 = sadd.s32 %s101, 1
    %s103 = scalar_select %p100, %s101, %s102
    %p106 = pneg %p100
    %p107 = scmp.eq.s32.totalorder %s9, 1
    %p108 = por %p106, %p107
    %p109 = scmp.ne.s32.totalorder %s101, %s104
    %p110 = scmp.eq.s32.totalorder %s9, 0
    %p111 = por %p109, %p110
    %p112 = scmp.ne.s32.totalorder %s101, %s104
    %p113 = scmp.eq.s32.totalorder %s14, 1
    %p114 = por %p112, %p113
    %p115 = scmp.ne.s32.totalorder %s104, %s105
    %p116 = scmp.eq.s32.totalorder %s14, 0
    %p117 = por %p115, %p116
    %p118 = scmp.ne.s32.totalorder %s104, %s105
    %p119 = scmp.eq.s32.totalorder %s15, 1
    %p120 = por %p118, %p119
    %p122 = scmp.ne.s32.totalorder %s105, %s121
    %p123 = scmp.eq.s32.totalorder %s15, 0
    %p124 = por %p122, %p123
    %p125 = scmp.le.s32.totalorder 1, %s9
    %p126 = scmp.lt.s32.totalorder %s9, 3
    %p127 = pnand %p125, %p126
    %p128 = pneg %p127
    // Predicated region
    $region9: #{textgcn_forward.7} parent=5 // pred_check
      _
    $region10: #{textgcn_forward.7} parent=5 // pred_check_branch
      %130 = sbr.rel (%p127) target = $region12
    $region11: #{textgcn_forward.7} parent=5 // pred_region
      %s131 = ssub.s32 %s9, 1
      // Predicated region
      $region13: #{textgcn_forward.7} parent=11 // pred_check
        %p132 = pneg %p70
      $region14: #{textgcn_forward.7} parent=11 // pred_check_branch
        %134 = sbr.rel (%p132) target = $region16
      $region15: #{textgcn_forward.7} parent=11 // pred_region
        _
      $region16: #{textgcn_forward.7} parent=11 // pred_fallthru
        _
      // Predicated region
      $region17: #{textgcn_forward.7} parent=11 // pred_check
        %p135 = pneg %p91
      $region18: #{textgcn_forward.7} parent=11 // pred_check_branch
        %137 = sbr.rel (%p135) target = $region20
      $region19: #{textgcn_forward.7} parent=11 // pred_region
        _
      $region20: #{textgcn_forward.7} parent=11 // pred_fallthru
        _
    $region12: #{textgcn_forward.7} parent=5 // pred_fallthru
      _
    %p138 = scmp.lt.s32.totalorder %s9, 2
    // Predicated region
    $region21: #{textgcn_forward.7} parent=5 // pred_check
      %p139 = pneg %p138
    $region22: #{textgcn_forward.7} parent=5 // pred_check_branch
      %141 = sbr.rel (%p139) target = $region24
    $region23: #{textgcn_forward.7} parent=5 // pred_region
      // Predicated region
      $region25: #{textgcn_forward.7} parent=23 // pred_check
        %p142 = pneg %p43
      $region26: #{textgcn_forward.7} parent=23 // pred_check_branch
        %144 = sbr.rel (%p142) target = $region28
      $region27: #{textgcn_forward.7} parent=23 // pred_region
        %s145 = smul.u32 16, %s16
        %s146 = smul.u32 2, %s17
        %p147 = scmp.lt.s32.totalorder %s145, 31
        %s148 = scalar_select %p147, %s145, 31
        %p149 = scmp.lt.s32.totalorder %s146, 1
        %s150 = scalar_select %p149, %s146, 1
        %s151 = smul.addr %s148, 2
        %s152 = sadd.s32 %s150, %s151
        %s153 = smul.addr %s152, 4
        %s154 = scalar_lea.vmem %s0, %s153
        %s155 = smul.u32 16, %s16
        %s156 = smul.u32 2, %s17
      $region28: #{textgcn_forward.7} parent=23 // pred_fallthru
        _
    $region24: #{textgcn_forward.7} parent=5 // pred_fallthru
      _
    %p157 = scmp.le.s32.totalorder 1, %s9
    %p158 = scmp.lt.s32.totalorder %s9, 3
    %p159 = pnand %p157, %p158
    %p160 = pneg %p159
    // Predicated region
    $region29: #{textgcn_forward.7} parent=5 // pred_check
      _
    $region30: #{textgcn_forward.7} parent=5 // pred_check_branch
      %162 = sbr.rel (%p159) target = $region32
    $region31: #{textgcn_forward.7} parent=5 // pred_region
      %s163 = ssub.s32 %s9, 1
      %s164 = smul.u32 16, %s18
      %s165 = smul.u32 2, %s19
      %p166 = scmp.lt.s32.totalorder %s164, 31
      %s167 = scalar_select %p166, %s164, 31
      %p168 = scmp.lt.s32.totalorder %s165, 1
      %s169 = scalar_select %p168, %s165, 1
      %s170 = smul.addr %s167, 2
      %s171 = sadd.s32 %s169, %s170
      %s172 = smul.addr %s171, 4
      %s173 = scalar_lea.vmem %s0, %s172
      %p174 = pneg %p49
      %p175 = pneg %p46
      %p176 = pneg %p70
      %p177 = pneg %p67
      %p178 = pneg %p91
      %p179 = pneg %p88
      %p180 = pneg %p117
      %p181 = pneg %p114
      %s182 = smul.u32 16, %s18
      %p183 = scmp.lt.s32.totalorder %s182, 31
      %s184 = scalar_select %p183, %s182, 31
      %s185 = smul.addr %s184, 8
      %s186 = scalar_lea.vmem %s3, %s185
      %s187 = smul.u32 16, %s18
      %s188 = smul.u32 2, %s19
      %p189 = scmp.lt.s32.totalorder %s187, 31
      %s190 = scalar_select %p189, %s187, 31
      %p191 = scmp.lt.s32.totalorder %s188, 1
      %s192 = scalar_select %p191, %s188, 1
      %s193 = smul.addr %s190, 2
      %s194 = sadd.s32 %s192, %s193
      %s195 = smul.addr %s194, 4
      %s196 = scalar_lea.vmem %s0, %s195
      %s197 = smul.u32 16, %s18
      %s198 = smul.u32 2, %s19
      %s199 = smul.u32 16, %s18
      %p200 = scmp.lt.s32.totalorder %s199, 31
      %s201 = scalar_select %p200, %s199, 31
      %s202 = smul.addr %s201, 8
      %s203 = scalar_lea.vmem %s3, %s202
      %s204 = smul.u32 16, %s18
      %p206 = scmp.eq.s32.totalorder %s19, 0
      // Predicated region
      $region33: #{textgcn_forward.7} parent=31 // pred_check
        %p207 = pneg %p206
      $region34: #{textgcn_forward.7} parent=31 // pred_check_branch
        %209 = sbr.rel (%p207) target = $region36
      $region35: #{textgcn_forward.7} parent=31 // pred_region
        %210 = vst [vmem:[#allocation2] sm:$0xff] 0.0
        %211 = vst [vmem:[#allocation2 + $0x8] sm:$0xff] 0.0
        %212 = vst [vmem:[#allocation2 + $0x10] sm:$0xff] 0.0
        %213 = vst [vmem:[#allocation2 + $0x18] sm:$0xff] 0.0
        %214 = vst [vmem:[#allocation2 + $0x20] sm:$0xff] 0.0
        %215 = vst [vmem:[#allocation2 + $0x28] sm:$0xff] 0.0
        %216 = vst [vmem:[#allocation2 + $0x30] sm:$0xff] 0.0
        %217 = vst [vmem:[#allocation2 + $0x38] sm:$0xff] 0.0
        %218 = vst [vmem:[#allocation2 + $0x40] sm:$0xff] 0.0
        %219 = vst [vmem:[#allocation2 + $0x48] sm:$0xff] 0.0
        %220 = vst [vmem:[#allocation2 + $0x50] sm:$0xff] 0.0
        %221 = vst [vmem:[#allocation2 + $0x58] sm:$0xff] 0.0
        %222 = vst [vmem:[#allocation2 + $0x60] sm:$0xff] 0.0
        %223 = vst [vmem:[#allocation2 + $0x68] sm:$0xff] 0.0
        %224 = vst [vmem:[#allocation2 + $0x70] sm:$0xff] 0.0
        %225 = vst [vmem:[#allocation2 + $0x78] sm:$0xff] 0.0
      $region36: #{textgcn_forward.7} parent=31 // pred_fallthru
        _
      %s226 = smul.u32 %s19, 256
      %v227 = vld [vmem:[#allocation2] sm:$0xff]
      %v228 = vld [vmem:[#allocation2 + $0x8] sm:$0xff]
      %v229 = vld [vmem:[#allocation2 + $0x10] sm:$0xff]
      %v230 = vld [vmem:[#allocation2 + $0x18] sm:$0xff]
      %v231 = vld [vmem:[#allocation2 + $0x20] sm:$0xff]
      %v232 = vld [vmem:[#allocation2 + $0x28] sm:$0xff]
      %v233 = vld [vmem:[#allocation2 + $0x30] sm:$0xff]
      %v234 = vld [vmem:[#allocation2 + $0x38] sm:$0xff]
      %v235 = vld [vmem:[#allocation2 + $0x40] sm:$0xff]
      %v236 = vld [vmem:[#allocation2 + $0x48] sm:$0xff]
      %v237 = vld [vmem:[#allocation2 + $0x50] sm:$0xff]
      %v238 = vld [vmem:[#allocation2 + $0x58] sm:$0xff]
      %v239 = vld [vmem:[#allocation2 + $0x60] sm:$0xff]
      %v240 = vld [vmem:[#allocation2 + $0x68] sm:$0xff]
      %v241 = vld [vmem:[#allocation2 + $0x70] sm:$0xff]
      %v242 = vld [vmem:[#allocation2 + $0x78] sm:$0xff]
      %v243 = vld [vmem:[%s196] sm:$0xff]
      %v244 = vld [vmem:[%s196 + $0x8] sm:$0xff]
      %v245 = vld [vmem:[%s196 + $0x10] sm:$0xff]
      %v246 = vld [vmem:[%s196 + $0x18] sm:$0xff]
      %v247 = vld [vmem:[%s196 + $0x20] sm:$0xff]
      %v248 = vld [vmem:[%s196 + $0x28] sm:$0xff]
      %v249 = vld [vmem:[%s196 + $0x30] sm:$0xff]
      %v250 = vld [vmem:[%s196 + $0x38] sm:$0xff]
      %v251 = vld [vmem:[%s196 + $0x40] sm:$0xff]
      %v252 = vld [vmem:[%s196 + $0x48] sm:$0xff]
      %v253 = vld [vmem:[%s196 + $0x50] sm:$0xff]
      %v254 = vld [vmem:[%s196 + $0x58] sm:$0xff]
      %v255 = vld [vmem:[%s196 + $0x60] sm:$0xff]
      %v256 = vld [vmem:[%s196 + $0x68] sm:$0xff]
      %v257 = vld [vmem:[%s196 + $0x70] sm:$0xff]
      %v258 = vld [vmem:[%s196 + $0x78] sm:$0xff]
      %s259 = sshra.s32 %s226, 3
      %s260 = sand.u32 %s226, 7
      %s261 = smul.addr %s259, 4
      %s262 = scalar_lea.vmem %s1, %s261
      %v263 = vld [vmem:[%s262] sm:$0xf]
      %v264 = vld [vmem:[%s262 + $0x4] sm:$0xf]
      %v265 = vld [vmem:[%s262 + $0x8] sm:$0xf]
      %v266 = vld [vmem:[%s262 + $0xc] sm:$0xf]
      %v267 = vld [vmem:[%s262 + $0x10] sm:$0xf]
      %v268 = vld [vmem:[%s262 + $0x14] sm:$0xf]
      %v269 = vld [vmem:[%s262 + $0x18] sm:$0xf]
      %v270 = vld [vmem:[%s262 + $0x1c] sm:$0xf]
      %v271 = vld [vmem:[%s262 + $0x20] sm:$0xf]
      %v272 = vld [vmem:[%s262 + $0x24] sm:$0xf]
      %v273 = vld [vmem:[%s262 + $0x28] sm:$0xf]
      %v274 = vld [vmem:[%s262 + $0x2c] sm:$0xf]
      %v275 = vld [vmem:[%s262 + $0x30] sm:$0xf]
      %v276 = vld [vmem:[%s262 + $0x34] sm:$0xf]
      %v277 = vld [vmem:[%s262 + $0x38] sm:$0xf]
      %v278 = vld [vmem:[%s262 + $0x3c] sm:$0xf]
      %v279 = vld [vmem:[%s262 + $0x40] sm:$0xf]
      %v280 = vld [vmem:[%s262 + $0x44] sm:$0xf]
      %v281 = vld [vmem:[%s262 + $0x48] sm:$0xf]
      %v282 = vld [vmem:[%s262 + $0x4c] sm:$0xf]
      %v283 = vld [vmem:[%s262 + $0x50] sm:$0xf]
      %v284 = vld [vmem:[%s262 + $0x54] sm:$0xf]
      %v285 = vld [vmem:[%s262 + $0x58] sm:$0xf]
      %v286 = vld [vmem:[%s262 + $0x5c] sm:$0xf]
      %v287 = vld [vmem:[%s262 + $0x60] sm:$0xf]
      %v288 = vld [vmem:[%s262 + $0x64] sm:$0xf]
      %v289 = vld [vmem:[%s262 + $0x68] sm:$0xf]
      %v290 = vld [vmem:[%s262 + $0x6c] sm:$0xf]
      %v291 = vld [vmem:[%s262 + $0x70] sm:$0xf]
      %v292 = vld [vmem:[%s262 + $0x74] sm:$0xf]
      %v293 = vld [vmem:[%s262 + $0x78] sm:$0xf]
      %v294 = vld [vmem:[%s262 + $0x7c] sm:$0xf]
      %v311 = vunpack.c.l.b16 %v243
      %v312 = vunpack.c.h.b16 %v243
      %v313 = vunpack.c.l.b16 %v244
      %v314 = vunpack.c.h.b16 %v244
      %v315 = vunpack.c.l.b16 %v245
      %v316 = vunpack.c.h.b16 %v245
      %v317 = vunpack.c.l.b16 %v246
      %v318 = vunpack.c.h.b16 %v246
      %v319 = vunpack.c.l.b16 %v247
      %v320 = vunpack.c.h.b16 %v247
      %v321 = vunpack.c.l.b16 %v248
      %v322 = vunpack.c.h.b16 %v248
      %v323 = vunpack.c.l.b16 %v249
      %v324 = vunpack.c.h.b16 %v249
      %v325 = vunpack.c.l.b16 %v250
      %v326 = vunpack.c.h.b16 %v250
      %v327 = vunpack.c.l.b16 %v251
      %v328 = vunpack.c.h.b16 %v251
      %v329 = vunpack.c.l.b16 %v252
      %v330 = vunpack.c.h.b16 %v252
      %v331 = vunpack.c.l.b16 %v253
      %v332 = vunpack.c.h.b16 %v253
      %v333 = vunpack.c.l.b16 %v254
      %v334 = vunpack.c.h.b16 %v254
      %v335 = vunpack.c.l.b16 %v255
      %v336 = vunpack.c.h.b16 %v255
      %v337 = vunpack.c.l.b16 %v256
      %v338 = vunpack.c.h.b16 %v256
      %v339 = vunpack.c.l.b16 %v257
      %v340 = vunpack.c.h.b16 %v257
      %v341 = vunpack.c.l.b16 %v258
      %v342 = vunpack.c.h.b16 %v258
      %v343 = vpack.c.b16 %v313, %v311
      %v344 = vpack.c.b16 %v314, %v312
      %v345 = vpack.c.b16 %v317, %v315
      %v346 = vpack.c.b16 %v318, %v316
      %v347 = vpack.c.b16 %v321, %v319
      %v348 = vpack.c.b16 %v322, %v320
      %v349 = vpack.c.b16 %v325, %v323
      %v350 = vpack.c.b16 %v326, %v324
      %v351 = vpack.c.b16 %v329, %v327
      %v352 = vpack.c.b16 %v330, %v328
      %v353 = vpack.c.b16 %v333, %v331
      %v354 = vpack.c.b16 %v334, %v332
      %v355 = vpack.c.b16 %v337, %v335
      %v356 = vpack.c.b16 %v338, %v336
      %v357 = vpack.c.b16 %v341, %v339
      %v358 = vpack.c.b16 %v342, %v340
      %v407 = vunpack.c.l.b16 %v263
      %v408 = vunpack.c.l.b16 %v264
      %v409 = vunpack.c.l.b16 %v265
      %v410 = vunpack.c.l.b16 %v266
      %v411 = vunpack.c.l.b16 %v267
      %v412 = vunpack.c.l.b16 %v268
      %v413 = vunpack.c.l.b16 %v269
      %v414 = vunpack.c.l.b16 %v270
      %v415 = vunpack.c.l.b16 %v271
      %v416 = vunpack.c.l.b16 %v272
      %v417 = vunpack.c.l.b16 %v273
      %v418 = vunpack.c.l.b16 %v274
      %v419 = vunpack.c.l.b16 %v275
      %v420 = vunpack.c.l.b16 %v276
      %v421 = vunpack.c.l.b16 %v277
      %v422 = vunpack.c.l.b16 %v278
      %v423 = vunpack.c.l.b16 %v279
      %v424 = vunpack.c.l.b16 %v280
      %v425 = vunpack.c.l.b16 %v281
      %v426 = vunpack.c.l.b16 %v282
      %v427 = vunpack.c.l.b16 %v283
      %v428 = vunpack.c.l.b16 %v284
      %v429 = vunpack.c.l.b16 %v285
      %v430 = vunpack.c.l.b16 %v286
      %v431 = vunpack.c.l.b16 %v287
      %v432 = vunpack.c.l.b16 %v288
      %v433 = vunpack.c.l.b16 %v289
      %v434 = vunpack.c.l.b16 %v290
      %v435 = vunpack.c.l.b16 %v291
      %v436 = vunpack.c.l.b16 %v292
      %v437 = vunpack.c.l.b16 %v293
      %v438 = vunpack.c.l.b16 %v294
      %v439 = vpack.c.b16 %v408, %v407
      %v440 = vpack.c.b16 %v410, %v409
      %v441 = vpack.c.b16 %v412, %v411
      %v442 = vpack.c.b16 %v414, %v413
      %v443 = vpack.c.b16 %v416, %v415
      %v444 = vpack.c.b16 %v418, %v417
      %v445 = vpack.c.b16 %v420, %v419
      %v446 = vpack.c.b16 %v422, %v421
      %v447 = vpack.c.b16 %v424, %v423
      %v448 = vpack.c.b16 %v426, %v425
      %v449 = vpack.c.b16 %v428, %v427
      %v450 = vpack.c.b16 %v430, %v429
      %v451 = vpack.c.b16 %v432, %v431
      %v452 = vpack.c.b16 %v434, %v433
      %v453 = vpack.c.b16 %v436, %v435
      %v454 = vpack.c.b16 %v438, %v437
      %471 = vmatprep.subr.bf16.mxu0 0
      %472 = vmatpush1.bf16.msra.mxu0 %v446
      %473 = vmatprep.subr.bf16.mxu0 0
      %474 = vmatpush1.bf16.msra.mxu0 %v445
      %475 = vmatprep.subr.bf16.mxu0 0
      %476 = vmatpush1.bf16.msra.mxu0 %v444
      %477 = vmatprep.subr.bf16.mxu0 0
      %478 = vmatpush1.bf16.msra.mxu0 %v443
      %479 = vmatprep.subr.bf16.mxu0 0
      %480 = vmatpush1.bf16.msra.mxu0 %v442
      %481 = vmatprep.subr.bf16.mxu0 0
      %482 = vmatpush1.bf16.msra.mxu0 %v441
      %483 = vmatprep.subr.bf16.mxu0 0
      %484 = vmatpush1.bf16.msra.mxu0 %v440
      %485 = vmatprep.subr.bf16.mxu0 0
      %486 = vmatpush1.bf16.msra.mxu0 %v439
      %487 = vmatprep.subr.bf16.mxu0 0
      %488 = vmatpush2.bf16.msra.mxu0 %v454
      %489 = vmatprep.subr.bf16.mxu0 0
      %490 = vmatpush2.bf16.msra.mxu0 %v453
      %491 = vmatprep.subr.bf16.mxu0 0
      %492 = vmatpush2.bf16.msra.mxu0 %v452
      %493 = vmatprep.subr.bf16.mxu0 0
      %494 = vmatpush2.bf16.msra.mxu0 %v451
      %495 = vmatprep.subr.bf16.mxu0 0
      %496 = vmatpush2.bf16.msra.mxu0 %v450
      %497 = vmatprep.subr.bf16.mxu0 0
      %498 = vmatpush2.bf16.msra.mxu0 %v449
      %499 = vmatprep.subr.bf16.mxu0 0
      %500 = vmatpush2.bf16.msra.mxu0 %v448
      %501 = vmatprep.subr.bf16.mxu0 0
      %502 = vmatpush2.bf16.msra.mxu0 %v447
      %503 = vmatprep.mubr.bf16.mxu0 %v344
      %504 = vmatmul.mubr.bf16.gmra.mxu0 %v343
      %v505 = vpop.f32.mrf.mxu0
      %v506 = vadd.f32 0.0, %v505
      %v507 = vpop.f32.mrf.mxu0
      %v508 = vpop.f32.mrf.mxu0
      %v509 = vadd.f32 0.0, %v508
      %v510 = vpop.f32.mrf.mxu0
      %511 = vmatprep.mubr.bf16.mxu0 %v346
      %512 = vmatmul.mubr.bf16.gmra.mxu0 %v345
      %v513 = vpop.f32.mrf.mxu0
      %v514 = vadd.f32 0.0, %v513
      %v515 = vpop.f32.mrf.mxu0
      %v516 = vpop.f32.mrf.mxu0
      %v517 = vadd.f32 0.0, %v516
      %v518 = vpop.f32.mrf.mxu0
      %519 = vmatprep.mubr.bf16.mxu0 %v348
      %520 = vmatmul.mubr.bf16.gmra.mxu0 %v347
      %v521 = vpop.f32.mrf.mxu0
      %v522 = vadd.f32 0.0, %v521
      %v523 = vpop.f32.mrf.mxu0
      %v524 = vpop.f32.mrf.mxu0
      %v525 = vadd.f32 0.0, %v524
      %v526 = vpop.f32.mrf.mxu0
      %527 = vmatprep.mubr.bf16.mxu0 %v350
      %528 = vmatmul.mubr.bf16.gmra.mxu0 %v349
      %v529 = vpop.f32.mrf.mxu0
      %v530 = vadd.f32 0.0, %v529
      %v531 = vpop.f32.mrf.mxu0
      %v532 = vpop.f32.mrf.mxu0
      %v533 = vadd.f32 0.0, %v532
      %v534 = vpop.f32.mrf.mxu0
      %535 = vmatprep.mubr.bf16.mxu0 %v352
      %536 = vmatmul.mubr.bf16.gmra.mxu0 %v351
      %v537 = vpop.f32.mrf.mxu0
      %v538 = vadd.f32 0.0, %v537
      %v539 = vpop.f32.mrf.mxu0
      %v540 = vpop.f32.mrf.mxu0
      %v541 = vadd.f32 0.0, %v540
      %v542 = vpop.f32.mrf.mxu0
      %543 = vmatprep.mubr.bf16.mxu0 %v354
      %544 = vmatmul.mubr.bf16.gmra.mxu0 %v353
      %v545 = vpop.f32.mrf.mxu0
      %v546 = vadd.f32 0.0, %v545
      %v547 = vpop.f32.mrf.mxu0
      %v548 = vpop.f32.mrf.mxu0
      %v549 = vadd.f32 0.0, %v548
      %v550 = vpop.f32.mrf.mxu0
      %551 = vmatprep.mubr.bf16.mxu0 %v356
      %552 = vmatmul.mubr.bf16.gmra.mxu0 %v355
      %v553 = vpop.f32.mrf.mxu0
      %v554 = vadd.f32 0.0, %v553
      %v555 = vpop.f32.mrf.mxu0
      %v556 = vpop.f32.mrf.mxu0
      %v557 = vadd.f32 0.0, %v556
      %v558 = vpop.f32.mrf.mxu0
      %559 = vmatprep.mubr.bf16.mxu0 %v358
      %560 = vmatmul.mubr.bf16.gmra.mxu0 %v357
      %v561 = vpop.f32.mrf.mxu0
      %v562 = vadd.f32 0.0, %v561
      %v563 = vpop.f32.mrf.mxu0
      %v564 = vpop.f32.mrf.mxu0
      %v565 = vadd.f32 0.0, %v564
      %v566 = vpop.f32.mrf.mxu0
      %567 = vdwg.mxu0
      %v568 = vadd.f32 %v227, %v506
      %v569 = vadd.f32 %v228, %v509
      %v570 = vadd.f32 %v229, %v514
      %v571 = vadd.f32 %v230, %v517
      %v572 = vadd.f32 %v231, %v522
      %v573 = vadd.f32 %v232, %v525
      %v574 = vadd.f32 %v233, %v530
      %v575 = vadd.f32 %v234, %v533
      %v576 = vadd.f32 %v235, %v538
      %v577 = vadd.f32 %v236, %v541
      %v578 = vadd.f32 %v237, %v546
      %v579 = vadd.f32 %v238, %v549
      %v580 = vadd.f32 %v239, %v554
      %v581 = vadd.f32 %v240, %v557
      %v582 = vadd.f32 %v241, %v562
      %v583 = vadd.f32 %v242, %v565
      %584 = vst [vmem:[#allocation2] sm:$0xff] %v568
      %585 = vst [vmem:[#allocation2 + $0x8] sm:$0xff] %v569
      %586 = vst [vmem:[#allocation2 + $0x10] sm:$0xff] %v570
      %587 = vst [vmem:[#allocation2 + $0x18] sm:$0xff] %v571
      %588 = vst [vmem:[#allocation2 + $0x20] sm:$0xff] %v572
      %589 = vst [vmem:[#allocation2 + $0x28] sm:$0xff] %v573
      %590 = vst [vmem:[#allocation2 + $0x30] sm:$0xff] %v574
      %591 = vst [vmem:[#allocation2 + $0x38] sm:$0xff] %v575
      %592 = vst [vmem:[#allocation2 + $0x40] sm:$0xff] %v576
      %593 = vst [vmem:[#allocation2 + $0x48] sm:$0xff] %v577
      %594 = vst [vmem:[#allocation2 + $0x50] sm:$0xff] %v578
      %595 = vst [vmem:[#allocation2 + $0x58] sm:$0xff] %v579
      %596 = vst [vmem:[#allocation2 + $0x60] sm:$0xff] %v580
      %597 = vst [vmem:[#allocation2 + $0x68] sm:$0xff] %v581
      %598 = vst [vmem:[#allocation2 + $0x70] sm:$0xff] %v582
      %599 = vst [vmem:[#allocation2 + $0x78] sm:$0xff] %v583
      // Predicated region
      $region37: #{textgcn_forward.7} parent=31 // pred_check
        %p600 = pneg %p206
      $region38: #{textgcn_forward.7} parent=31 // pred_check_branch
        %602 = sbr.rel (%p600) target = $region40
      $region39: #{textgcn_forward.7} parent=31 // pred_region
        %v603 = vld [vmem:[#allocation2] sm:$0xff]
        %v604 = vld [vmem:[#allocation2 + $0x8] sm:$0xff]
        %v605 = vld [vmem:[#allocation2 + $0x10] sm:$0xff]
        %v606 = vld [vmem:[#allocation2 + $0x18] sm:$0xff]
        %v607 = vld [vmem:[#allocation2 + $0x20] sm:$0xff]
        %v608 = vld [vmem:[#allocation2 + $0x28] sm:$0xff]
        %v609 = vld [vmem:[#allocation2 + $0x30] sm:$0xff]
        %v610 = vld [vmem:[#allocation2 + $0x38] sm:$0xff]
        %v611 = vld [vmem:[#allocation2 + $0x40] sm:$0xff]
        %v612 = vld [vmem:[#allocation2 + $0x48] sm:$0xff]
        %v613 = vld [vmem:[#allocation2 + $0x50] sm:$0xff]
        %v614 = vld [vmem:[#allocation2 + $0x58] sm:$0xff]
        %v615 = vld [vmem:[#allocation2 + $0x60] sm:$0xff]
        %v616 = vld [vmem:[#allocation2 + $0x68] sm:$0xff]
        %v617 = vld [vmem:[#allocation2 + $0x70] sm:$0xff]
        %v618 = vld [vmem:[#allocation2 + $0x78] sm:$0xff]
        %v619 = vld [vmem:[%s2] sm:$0x1]
        %v621 = vlaneseq
        %v622 = vshrl.u32 %v621, 7
        %v623 = vsub.s32 0, %v622
        %v624 = vrot.slane %v619, %v623
        %v626 = vadd.f32 %v603, %v624
        %v627 = vadd.f32 %v604, %v624
        %v628 = vadd.f32 %v605, %v624
        %v629 = vadd.f32 %v606, %v624
        %v630 = vadd.f32 %v607, %v624
        %v631 = vadd.f32 %v608, %v624
        %v632 = vadd.f32 %v609, %v624
        %v633 = vadd.f32 %v610, %v624
        %v634 = vadd.f32 %v611, %v624
        %v635 = vadd.f32 %v612, %v624
        %v636 = vadd.f32 %v613, %v624
        %v637 = vadd.f32 %v614, %v624
        %v638 = vadd.f32 %v615, %v624
        %v639 = vadd.f32 %v616, %v624
        %v640 = vadd.f32 %v617, %v624
        %v641 = vadd.f32 %v618, %v624
        %v642 = vlaneseq
        %v643 = vand.u32 %v642, 127
        %vm644 = vcmp.lt.s32.totalorder %v643, 16
        %v645 = vsel %vm644, %v626, -1e+30
        %v646 = vsel %vm644, %v627, -1e+30
        %v647 = vsel %vm644, %v628, -1e+30
        %v648 = vsel %vm644, %v629, -1e+30
        %v649 = vsel %vm644, %v630, -1e+30
        %v650 = vsel %vm644, %v631, -1e+30
        %v651 = vsel %vm644, %v632, -1e+30
        %v652 = vsel %vm644, %v633, -1e+30
        %v653 = vsel %vm644, %v634, -1e+30
        %v654 = vsel %vm644, %v635, -1e+30
        %v655 = vsel %vm644, %v636, -1e+30
        %v656 = vsel %vm644, %v637, -1e+30
        %v657 = vsel %vm644, %v638, -1e+30
        %v658 = vsel %vm644, %v639, -1e+30
        %v659 = vsel %vm644, %v640, -1e+30
        %v660 = vsel %vm644, %v641, -1e+30
        %661 = vmax.xlane.f32.xlu0 %v645
        %v662 = vpop.xlane.xlu0 %661
        %663 = vmax.xlane.f32.xlu0 %v646
        %v664 = vpop.xlane.xlu0 %663
        %665 = vmax.xlane.f32.xlu0 %v647
        %v666 = vpop.xlane.xlu0 %665
        %667 = vmax.xlane.f32.xlu0 %v648
        %v668 = vpop.xlane.xlu0 %667
        %669 = vmax.xlane.f32.xlu0 %v649
        %v670 = vpop.xlane.xlu0 %669
        %671 = vmax.xlane.f32.xlu0 %v650
        %v672 = vpop.xlane.xlu0 %671
        %673 = vmax.xlane.f32.xlu0 %v651
        %v674 = vpop.xlane.xlu0 %673
        %675 = vmax.xlane.f32.xlu0 %v652
        %v676 = vpop.xlane.xlu0 %675
        %677 = vmax.xlane.f32.xlu0 %v653
        %v678 = vpop.xlane.xlu0 %677
        %679 = vmax.xlane.f32.xlu0 %v654
        %v680 = vpop.xlane.xlu0 %679
        %681 = vmax.xlane.f32.xlu0 %v655
        %v682 = vpop.xlane.xlu0 %681
        %683 = vmax.xlane.f32.xlu0 %v656
        %v684 = vpop.xlane.xlu0 %683
        %685 = vmax.xlane.f32.xlu0 %v657
        %v686 = vpop.xlane.xlu0 %685
        %687 = vmax.xlane.f32.xlu0 %v658
        %v688 = vpop.xlane.xlu0 %687
        %689 = vmax.xlane.f32.xlu0 %v659
        %v690 = vpop.xlane.xlu0 %689
        %691 = vmax.xlane.f32.xlu0 %v660
        %v692 = vpop.xlane.xlu0 %691
        %v693 = vsub.f32 %v645, %v662
        %v694 = vsub.f32 %v646, %v664
        %v695 = vsub.f32 %v647, %v666
        %v696 = vsub.f32 %v648, %v668
        %v697 = vsub.f32 %v649, %v670
        %v698 = vsub.f32 %v650, %v672
        %v699 = vsub.f32 %v651, %v674
        %v700 = vsub.f32 %v652, %v676
        %v701 = vsub.f32 %v653, %v678
        %v702 = vsub.f32 %v654, %v680
        %v703 = vsub.f32 %v655, %v682
        %v704 = vsub.f32 %v656, %v684
        %v705 = vsub.f32 %v657, %v686
        %v706 = vsub.f32 %v658, %v688
        %v707 = vsub.f32 %v659, %v690
        %v708 = vsub.f32 %v660, %v692
        %v709 = vmul.f32 %v693, 1.442695
        %v710 = vpow.pop %v709
        %v711 = vmul.f32 %v694, 1.442695
        %v712 = vpow.pop %v711
        %v713 = vmul.f32 %v695, 1.442695
        %v714 = vpow.pop %v713
        %v715 = vmul.f32 %v696, 1.442695
        %v716 = vpow.pop %v715
        %v717 = vmul.f32 %v697, 1.442695
        %v718 = vpow.pop %v717
        %v719 = vmul.f32 %v698, 1.442695
        %v720 = vpow.pop %v719
        %v721 = vmul.f32 %v699, 1.442695
        %v722 = vpow.pop %v721
        %v723 = vmul.f32 %v700, 1.442695
        %v724 = vpow.pop %v723
        %v725 = vmul.f32 %v701, 1.442695
        %v726 = vpow.pop %v725
        %v727 = vmul.f32 %v702, 1.442695
        %v728 = vpow.pop %v727
        %v729 = vmul.f32 %v703, 1.442695
        %v730 = vpow.pop %v729
        %v731 = vmul.f32 %v704, 1.442695
        %v732 = vpow.pop %v731
        %v733 = vmul.f32 %v705, 1.442695
        %v734 = vpow.pop %v733
        %v735 = vmul.f32 %v706, 1.442695
        %v736 = vpow.pop %v735
        %v737 = vmul.f32 %v707, 1.442695
        %v738 = vpow.pop %v737
        %v739 = vmul.f32 %v708, 1.442695
        %v740 = vpow.pop %v739
        %741 = vadd.xlane.f32.xlu0 %v710
        %v742 = vpop.xlane.xlu0 %741
        %743 = vadd.xlane.f32.xlu0 %v712
        %v744 = vpop.xlane.xlu0 %743
        %745 = vadd.xlane.f32.xlu0 %v714
        %v746 = vpop.xlane.xlu0 %745
        %747 = vadd.xlane.f32.xlu0 %v716
        %v748 = vpop.xlane.xlu0 %747
        %749 = vadd.xlane.f32.xlu0 %v718
        %v750 = vpop.xlane.xlu0 %749
        %751 = vadd.xlane.f32.xlu0 %v720
        %v752 = vpop.xlane.xlu0 %751
        %753 = vadd.xlane.f32.xlu0 %v722
        %v754 = vpop.xlane.xlu0 %753
        %755 = vadd.xlane.f32.xlu0 %v724
        %v756 = vpop.xlane.xlu0 %755
        %757 = vadd.xlane.f32.xlu0 %v726
        %v758 = vpop.xlane.xlu0 %757
        %759 = vadd.xlane.f32.xlu0 %v728
        %v760 = vpop.xlane.xlu0 %759
        %761 = vadd.xlane.f32.xlu0 %v730
        %v762 = vpop.xlane.xlu0 %761
        %763 = vadd.xlane.f32.xlu0 %v732
        %v764 = vpop.xlane.xlu0 %763
        %765 = vadd.xlane.f32.xlu0 %v734
        %v766 = vpop.xlane.xlu0 %765
        %767 = vadd.xlane.f32.xlu0 %v736
        %v768 = vpop.xlane.xlu0 %767
        %769 = vadd.xlane.f32.xlu0 %v738
        %v770 = vpop.xlane.xlu0 %769
        %771 = vadd.xlane.f32.xlu0 %v740
        %v772 = vpop.xlane.xlu0 %771
        %v773 = vrcp.pop %v742
        %v774 = vmul.f32 %v710, %v773
        %v775 = vrcp.pop %v744
        %v776 = vmul.f32 %v712, %v775
        %v777 = vrcp.pop %v746
        %v778 = vmul.f32 %v714, %v777
        %v779 = vrcp.pop %v748
        %v780 = vmul.f32 %v716, %v779
        %v781 = vrcp.pop %v750
        %v782 = vmul.f32 %v718, %v781
        %v783 = vrcp.pop %v752
        %v784 = vmul.f32 %v720, %v783
        %v785 = vrcp.pop %v754
        %v786 = vmul.f32 %v722, %v785
        %v787 = vrcp.pop %v756
        %v788 = vmul.f32 %v724, %v787
        %v789 = vrcp.pop %v758
        %v790 = vmul.f32 %v726, %v789
        %v791 = vrcp.pop %v760
        %v792 = vmul.f32 %v728, %v791
        %v793 = vrcp.pop %v762
        %v794 = vmul.f32 %v730, %v793
        %v795 = vrcp.pop %v764
        %v796 = vmul.f32 %v732, %v795
        %v797 = vrcp.pop %v766
        %v798 = vmul.f32 %v734, %v797
        %v799 = vrcp.pop %v768
        %v800 = vmul.f32 %v736, %v799
        %v801 = vrcp.pop %v770
        %v802 = vmul.f32 %v738, %v801
        %v803 = vrcp.pop %v772
        %v804 = vmul.f32 %v740, %v803
        %805 = vst [vmem:[%s203] sm:$0xff] %v774
        %806 = vst [vmem:[%s203 + $0x8] sm:$0xff] %v776
        %807 = vst [vmem:[%s203 + $0x10] sm:$0xff] %v778
        %808 = vst [vmem:[%s203 + $0x18] sm:$0xff] %v780
        %809 = vst [vmem:[%s203 + $0x20] sm:$0xff] %v782
        %810 = vst [vmem:[%s203 + $0x28] sm:$0xff] %v784
        %811 = vst [vmem:[%s203 + $0x30] sm:$0xff] %v786
        %812 = vst [vmem:[%s203 + $0x38] sm:$0xff] %v788
        %813 = vst [vmem:[%s203 + $0x40] sm:$0xff] %v790
        %814 = vst [vmem:[%s203 + $0x48] sm:$0xff] %v792
        %815 = vst [vmem:[%s203 + $0x50] sm:$0xff] %v794
        %816 = vst [vmem:[%s203 + $0x58] sm:$0xff] %v796
        %817 = vst [vmem:[%s203 + $0x60] sm:$0xff] %v798
        %818 = vst [vmem:[%s203 + $0x68] sm:$0xff] %v800
        %819 = vst [vmem:[%s203 + $0x70] sm:$0xff] %v802
        %820 = vst [vmem:[%s203 + $0x78] sm:$0xff] %v804
      $region40: #{textgcn_forward.7} parent=31 // pred_fallthru
        _
      %s821 = smul.u32 16, %s18
      %p822 = scmp.lt.s32.totalorder %s821, 31
      %s823 = scalar_select %p822, %s821, 31
      %s824 = smul.addr %s823, 8
      %s825 = scalar_lea.vmem %s3, %s824
      // Predicated region
      $region41: #{textgcn_forward.7} parent=31 // pred_check
        %p826 = pneg %p114
      $region42: #{textgcn_forward.7} parent=31 // pred_check_branch
        %828 = sbr.rel (%p826) target = $region44
      $region43: #{textgcn_forward.7} parent=31 // pred_region
        %s829 = smul.u32 16, %s18
      $region44: #{textgcn_forward.7} parent=31 // pred_fallthru
        _
    $region32: #{textgcn_forward.7} parent=5 // pred_fallthru
      _
    %p830 = scmp.le.s32.totalorder 2, %s9
    // Predicated region
    $region45: #{textgcn_forward.7} parent=5 // pred_check
      %p831 = pneg %p830
    $region46: #{textgcn_forward.7} parent=5 // pred_check_branch
      %833 = sbr.rel (%p831) target = $region48
    $region47: #{textgcn_forward.7} parent=5 // pred_region
      %s834 = ssub.s32 %s9, 2
      // Predicated region
      $region49: #{textgcn_forward.7} parent=47 // pred_check
        %p835 = pneg %p120
      $region50: #{textgcn_forward.7} parent=47 // pred_check_branch
        %837 = sbr.rel (%p835) target = $region52
      $region51: #{textgcn_forward.7} parent=47 // pred_region
        %s838 = smul.u32 16, %s20
        %p839 = scmp.lt.s32.totalorder %s838, 31
        %s840 = scalar_select %p839, %s838, 31
        %s841 = smul.addr %s840, 8
        %s842 = scalar_lea.vmem %s3, %s841
      $region52: #{textgcn_forward.7} parent=47 // pred_fallthru
        _
    $region48: #{textgcn_forward.7} parent=5 // pred_fallthru
      _
  $region6: #{textgcn_forward.7} parent=0 // loop_footer
    %s13 = sadd.s32 1, %s9
  $region7: #{textgcn_forward.7} parent=0 // loop_footer_branch
    %8 = sbr.rel target = $region3
  $region8: #{textgcn_forward.7} parent=0 // loop_exit
    _

// kernel: textgcn_forward.5
$region0: #{textgcn_forward.5}
  #allocation0 [shape = 'u32[]', space=smem, size = 0x4, offset = 0x4, fixed_abs, tag = 'smem constant byte address 0x4 - core index']
  #allocation1 [shape = 'u32[144,128]{1,0:T(1,128)}', space=vmem, size = 0x12000, scoped, tag = 'internal scratch']
  #allocation2 [shape = 'f32[128,128]{1,0:T(8,128)}', space=vmem, size = 0x10000, scoped, tag = 'scratch operand']
  %s0 = inlined_call_operand.vmem [shape: bf16[256,256], index: 0, kind: input, shape index: {}]
  %s1 = inlined_call_operand.vmem [shape: bf16[256,128], index: 1, kind: input, shape index: {}]
  %s2 = inlined_call_operand.vmem [shape: f32[1,128], index: 2, kind: input, shape index: {}]
  %s3 = inlined_call_operand.vmem [shape: bf16[128,128], index: 3, kind: input, shape index: {}]
  %s4 = inlined_call_operand.vmem [shape: bf16[256,128], index: 4, kind: output, shape index: {}]
  %s5 = sld [smem:[#allocation0]]
  $region57: #{textgcn_forward.5} parent=0
    _
  %s7 = ssub.s32 1, %s5
  %s8 = scalar_select 0, %s7, %s5
  loop: start=0, step=1, limit=4
  $region2: #{textgcn_forward.5} parent=0 // loop_pre_header
    _
  $region3: #{textgcn_forward.5} parent=0 // loop_header
    %s10 = sphi 0, %s14
    %p11 = scmp.ge.s32.totalorder %s10, 4
    %s17 = sphi 0, %s29
    %s18 = sphi 0, %s25
    %s19 = sphi 0, %s17
    %s20 = sphi 0, %s18
    %s21 = sphi 0, %s19
    %s22 = sphi 0, %s20
    %s34 = sphi 0, %s36
    %s37 = sphi 0, %s34
    %s38 = sphi 0, %s37
    %s54 = sphi 0, %s38
    %s58 = sphi 0, %s58
    %s60 = sphi 0, %s58
    %s61 = sphi 0, %s60
    %s75 = sphi 0, %s61
    %s79 = sphi 0, %s79
    %s81 = sphi 0, %s79
    %s82 = sphi 0, %s81
    %s96 = sphi 0, %s82
    %s100 = sphi 0, %s100
    %s102 = sphi 0, %s100
    %s103 = sphi 0, %s102
    %s117 = sphi 0, %s103
    %s123 = sphi 0, %s125
    %s126 = sphi 0, %s123
    %s127 = sphi 0, %s126
    %s143 = sphi 0, %s127
  $region4: #{textgcn_forward.5} parent=0 // loop_header_branch
    %13 = sbr.rel (%p11) target = $region8
  $region5: #{textgcn_forward.5} parent=0 // loop_body
    %s15 = ssub.s32 %s10, 1
    %s16 = ssub.s32 %s10, 2
    %s23 = sadd.s32 1, %s18
    %p24 = scmp.ge.s32.totalorder %s23, 1
    %s25 = scalar_select %p24, 0, %s23
    %s26 = sadd.s32 1, %s17
    %s27 = scalar_select %p24, %s26, %s17
    %p28 = scmp.ge.s32.totalorder %s27, 2
    %s29 = scalar_select %p28, 0, %s27
    %s30 = ssub.s32 %s17, %s29
    %s31 = ssub.s32 %s18, %s25
    %s32 = sor.u32 %s30, %s31
    %p33 = scmp.eq.s32.totalorder %s32, 0
    %s35 = sadd.s32 %s34, 1
    %s36 = scalar_select %p33, %s34, %s35
    %p39 = pneg %p33
    %p40 = scmp.eq.s32.totalorder %s10, 1
    %p41 = por %p39, %p40
    %p42 = scmp.ne.s32.totalorder %s34, %s37
    %p43 = scmp.eq.s32.totalorder %s10, 0
    %p44 = por %p42, %p43
    %p45 = scmp.ne.s32.totalorder %s34, %s37
    %p46 = scmp.eq.s32.totalorder %s15, 1
    %p47 = por %p45, %p46
    %p48 = scmp.ne.s32.totalorder %s37, %s38
    %p49 = scmp.eq.s32.totalorder %s15, 0
    %p50 = por %p48, %p49
    %p51 = scmp.ne.s32.totalorder %s37, %s38
    %p52 = scmp.eq.s32.totalorder %s16, 1
    %p53 = por %p51, %p52
    %p55 = scmp.ne.s32.totalorder %s38, %s54
    %p56 = scmp.eq.s32.totalorder %s16, 0
    %p57 = por %p55, %p56
    %s59 = sadd.s32 %s58, 1
    %p62 = scmp.eq.s32.totalorder %s10, 1
    %p63 = scmp.ne.s32.totalorder %s58, %s60
    %p64 = scmp.eq.s32.totalorder %s10, 0
    %p65 = por %p63, %p64
    %p66 = scmp.ne.s32.totalorder %s58, %s60
    %p67 = scmp.eq.s32.totalorder %s15, 1
    %p68 = por %p66, %p67
    %p69 = scmp.ne.s32.totalorder %s60, %s61
    %p70 = scmp.eq.s32.totalorder %s15, 0
    %p71 = por %p69, %p70
    %p72 = scmp.ne.s32.totalorder %s60, %s61
    %p73 = scmp.eq.s32.totalorder %s16, 1
    %p74 = por %p72, %p73
    %p76 = scmp.ne.s32.totalorder %s61, %s75
    %p77 = scmp.eq.s32.totalorder %s16, 0
    %p78 = por %p76, %p77
    %s80 = sadd.s32 %s79, 1
    %p83 = scmp.eq.s32.totalorder %s10, 1
    %p84 = scmp.ne.s32.totalorder %s79, %s81
    %p85 = scmp.eq.s32.totalorder %s10, 0
    %p86 = por %p84, %p85
    %p87 = scmp.ne.s32.totalorder %s79, %s81
    %p88 = scmp.eq.s32.totalorder %s15, 1
    %p89 = por %p87, %p88
    %p90 = scmp.ne.s32.totalorder %s81, %s82
    %p91 = scmp.eq.s32.totalorder %s15, 0
    %p92 = por %p90, %p91
    %p93 = scmp.ne.s32.totalorder %s81, %s82
    %p94 = scmp.eq.s32.totalorder %s16, 1
    %p95 = por %p93, %p94
    %p97 = scmp.ne.s32.totalorder %s82, %s96
    %p98 = scmp.eq.s32.totalorder %s16, 0
    %p99 = por %p97, %p98
    %s101 = sadd.s32 %s100, 1
    %p104 = scmp.eq.s32.totalorder %s10, 1
    %p105 = scmp.ne.s32.totalorder %s100, %s102
    %p106 = scmp.eq.s32.totalorder %s10, 0
    %p107 = por %p105, %p106
    %p108 = scmp.ne.s32.totalorder %s100, %s102
    %p109 = scmp.eq.s32.totalorder %s15, 1
    %p110 = por %p108, %p109
    %p111 = scmp.ne.s32.totalorder %s102, %s103
    %p112 = scmp.eq.s32.totalorder %s15, 0
    %p113 = por %p111, %p112
    %p114 = scmp.ne.s32.totalorder %s102, %s103
    %p115 = scmp.eq.s32.totalorder %s16, 1
    %p116 = por %p114, %p115
    %p118 = scmp.ne.s32.totalorder %s103, %s117
    %p119 = scmp.eq.s32.totalorder %s16, 0
    %p120 = por %p118, %p119
    %s121 = ssub.s32 %s17, %s29
    %p122 = scmp.eq.s32.totalorder %s121, 0
    %s124 = sadd.s32 %s123, 1
    %s125 = scalar_select %p122, %s123, %s124
    %p128 = pneg %p122
    %p129 = scmp.eq.s32.totalorder %s10, 1
    %p130 = por %p128, %p129
    %p131 = scmp.ne.s32.totalorder %s123, %s126
    %p132 = scmp.eq.s32.totalorder %s10, 0
    %p133 = por %p131, %p132
    %p134 = scmp.ne.s32.totalorder %s123, %s126
    %p135 = scmp.eq.s32.totalorder %s15, 1
    %p136 = por %p134, %p135
    %p137 = scmp.ne.s32.totalorder %s126, %s127
    %p138 = scmp.eq.s32.totalorder %s15, 0
    %p139 = por %p137, %p138
    %p140 = scmp.ne.s32.totalorder %s126, %s127
    %p141 = scmp.eq.s32.totalorder %s16, 1
    %p142 = por %p140, %p141
    %p144 = scmp.ne.s32.totalorder %s127, %s143
    %p145 = scmp.eq.s32.totalorder %s16, 0
    %p146 = por %p144, %p145
    %p147 = scmp.le.s32.totalorder 1, %s10
    %p148 = scmp.lt.s32.totalorder %s10, 3
    %p149 = pnand %p147, %p148
    %p150 = pneg %p149
    // Predicated region
    $region9: #{textgcn_forward.5} parent=5 // pred_check
      _
    $region10: #{textgcn_forward.5} parent=5 // pred_check_branch
      %152 = sbr.rel (%p149) target = $region12
    $region11: #{textgcn_forward.5} parent=5 // pred_region
      %s153 = ssub.s32 %s10, 1
      // Predicated region
      $region13: #{textgcn_forward.5} parent=11 // pred_check
        %p154 = pneg %p71
      $region14: #{textgcn_forward.5} parent=11 // pred_check_branch
        %156 = sbr.rel (%p154) target = $region16
      $region15: #{textgcn_forward.5} parent=11 // pred_region
        _
      $region16: #{textgcn_forward.5} parent=11 // pred_fallthru
        _
      // Predicated region
      $region17: #{textgcn_forward.5} parent=11 // pred_check
        %p157 = pneg %p92
      $region18: #{textgcn_forward.5} parent=11 // pred_check_branch
        %159 = sbr.rel (%p157) target = $region20
      $region19: #{textgcn_forward.5} parent=11 // pred_region
        _
      $region20: #{textgcn_forward.5} parent=11 // pred_fallthru
        _
      // Predicated region
      $region21: #{textgcn_forward.5} parent=11 // pred_check
        %p160 = pneg %p113
      $region22: #{textgcn_forward.5} parent=11 // pred_check_branch
        %162 = sbr.rel (%p160) target = $region24
      $region23: #{textgcn_forward.5} parent=11 // pred_region
        _
      $region24: #{textgcn_forward.5} parent=11 // pred_fallthru
        _
    $region12: #{textgcn_forward.5} parent=5 // pred_fallthru
      _
    %p163 = scmp.lt.s32.totalorder %s10, 2
    // Predicated region
    $region25: #{textgcn_forward.5} parent=5 // pred_check
      %p164 = pneg %p163
    $region26: #{textgcn_forward.5} parent=5 // pred_check_branch
      %166 = sbr.rel (%p164) target = $region28
    $region27: #{textgcn_forward.5} parent=5 // pred_region
      // Predicated region
      $region29: #{textgcn_forward.5} parent=27 // pred_check
        %p167 = pneg %p44
      $region30: #{textgcn_forward.5} parent=27 // pred_check_branch
        %169 = sbr.rel (%p167) target = $region32
      $region31: #{textgcn_forward.5} parent=27 // pred_region
        %s170 = smul.u32 16, %s17
        %s171 = smul.u32 2, %s18
        %p172 = scmp.lt.s32.totalorder %s170, 31
        %s173 = scalar_select %p172, %s170, 31
        %p174 = scmp.lt.s32.totalorder %s171, 1
        %s175 = scalar_select %p174, %s171, 1
        %s176 = smul.addr %s173, 2
        %s177 = sadd.s32 %s175, %s176
        %s178 = smul.addr %s177, 4
        %s179 = scalar_lea.vmem %s0, %s178
        %s180 = smul.u32 16, %s17
        %s181 = smul.u32 2, %s18
      $region32: #{textgcn_forward.5} parent=27 // pred_fallthru
        _
    $region28: #{textgcn_forward.5} parent=5 // pred_fallthru
      _
    %p182 = scmp.le.s32.totalorder 1, %s10
    %p183 = scmp.lt.s32.totalorder %s10, 3
    %p184 = pnand %p182, %p183
    %p185 = pneg %p184
    // Predicated region
    $region33: #{textgcn_forward.5} parent=5 // pred_check
      _
    $region34: #{textgcn_forward.5} parent=5 // pred_check_branch
      %187 = sbr.rel (%p184) target = $region36
    $region35: #{textgcn_forward.5} parent=5 // pred_region
      %s188 = ssub.s32 %s10, 1
      %s189 = smul.u32 16, %s19
      %s190 = smul.u32 2, %s20
      %p191 = scmp.lt.s32.totalorder %s189, 31
      %s192 = scalar_select %p191, %s189, 31
      %p193 = scmp.lt.s32.totalorder %s190, 1
      %s194 = scalar_select %p193, %s190, 1
      %s195 = smul.addr %s192, 2
      %s196 = sadd.s32 %s194, %s195
      %s197 = smul.addr %s196, 4
      %s198 = scalar_lea.vmem %s0, %s197
      %p199 = pneg %p50
      %p200 = pneg %p47
      %p201 = pneg %p71
      %p202 = pneg %p68
      %p203 = pneg %p92
      %p204 = pneg %p89
      %p205 = pneg %p113
      %p206 = pneg %p110
      %p207 = pneg %p139
      %p208 = pneg %p136
      %s209 = smul.u32 16, %s19
      %p210 = scmp.lt.s32.totalorder %s209, 31
      %s211 = scalar_select %p210, %s209, 31
      %s212 = smul.addr %s211, 4
      %s213 = scalar_lea.vmem %s4, %s212
      %s214 = smul.u32 16, %s19
      %s215 = smul.u32 2, %s20
      %p216 = scmp.lt.s32.totalorder %s214, 31
      %s217 = scalar_select %p216, %s214, 31
      %p218 = scmp.lt.s32.totalorder %s215, 1
      %s219 = scalar_select %p218, %s215, 1
      %s220 = smul.addr %s217, 2
      %s221 = sadd.s32 %s219, %s220
      %s222 = smul.addr %s221, 4
      %s223 = scalar_lea.vmem %s0, %s222
      %s224 = smul.u32 16, %s19
      %s225 = smul.u32 2, %s20
      %s226 = smul.u32 16, %s19
      %p227 = scmp.lt.s32.totalorder %s226, 31
      %s228 = scalar_select %p227, %s226, 31
      %s229 = smul.addr %s228, 4
      %s230 = scalar_lea.vmem %s4, %s229
      %s231 = smul.u32 16, %s19
      %p233 = scmp.eq.s32.totalorder %s20, 0
      // Predicated region
      $region37: #{textgcn_forward.5} parent=35 // pred_check
        %p234 = pneg %p233
      $region38: #{textgcn_forward.5} parent=35 // pred_check_branch
        %236 = sbr.rel (%p234) target = $region40
      $region39: #{textgcn_forward.5} parent=35 // pred_region
        %237 = vst [vmem:[#allocation2] sm:$0xff] 0.0
        %238 = vst [vmem:[#allocation2 + $0x8] sm:$0xff] 0.0
        %239 = vst [vmem:[#allocation2 + $0x10] sm:$0xff] 0.0
        %240 = vst [vmem:[#allocation2 + $0x18] sm:$0xff] 0.0
        %241 = vst [vmem:[#allocation2 + $0x20] sm:$0xff] 0.0
        %242 = vst [vmem:[#allocation2 + $0x28] sm:$0xff] 0.0
        %243 = vst [vmem:[#allocation2 + $0x30] sm:$0xff] 0.0
        %244 = vst [vmem:[#allocation2 + $0x38] sm:$0xff] 0.0
        %245 = vst [vmem:[#allocation2 + $0x40] sm:$0xff] 0.0
        %246 = vst [vmem:[#allocation2 + $0x48] sm:$0xff] 0.0
        %247 = vst [vmem:[#allocation2 + $0x50] sm:$0xff] 0.0
        %248 = vst [vmem:[#allocation2 + $0x58] sm:$0xff] 0.0
        %249 = vst [vmem:[#allocation2 + $0x60] sm:$0xff] 0.0
        %250 = vst [vmem:[#allocation2 + $0x68] sm:$0xff] 0.0
        %251 = vst [vmem:[#allocation2 + $0x70] sm:$0xff] 0.0
        %252 = vst [vmem:[#allocation2 + $0x78] sm:$0xff] 0.0
      $region40: #{textgcn_forward.5} parent=35 // pred_fallthru
        _
      %s253 = smul.u32 %s20, 256
      %v254 = vld [vmem:[#allocation2] sm:$0xff]
      %v255 = vld [vmem:[#allocation2 + $0x8] sm:$0xff]
      %v256 = vld [vmem:[#allocation2 + $0x10] sm:$0xff]
      %v257 = vld [vmem:[#allocation2 + $0x18] sm:$0xff]
      %v258 = vld [vmem:[#allocation2 + $0x20] sm:$0xff]
      %v259 = vld [vmem:[#allocation2 + $0x28] sm:$0xff]
      %v260 = vld [vmem:[#allocation2 + $0x30] sm:$0xff]
      %v261 = vld [vmem:[#allocation2 + $0x38] sm:$0xff]
      %v262 = vld [vmem:[#allocation2 + $0x40] sm:$0xff]
      %v263 = vld [vmem:[#allocation2 + $0x48] sm:$0xff]
      %v264 = vld [vmem:[#allocation2 + $0x50] sm:$0xff]
      %v265 = vld [vmem:[#allocation2 + $0x58] sm:$0xff]
      %v266 = vld [vmem:[#allocation2 + $0x60] sm:$0xff]
      %v267 = vld [vmem:[#allocation2 + $0x68] sm:$0xff]
      %v268 = vld [vmem:[#allocation2 + $0x70] sm:$0xff]
      %v269 = vld [vmem:[#allocation2 + $0x78] sm:$0xff]
      %v270 = vld [vmem:[%s223] sm:$0xff]
      %v271 = vld [vmem:[%s223 + $0x8] sm:$0xff]
      %v272 = vld [vmem:[%s223 + $0x10] sm:$0xff]
      %v273 = vld [vmem:[%s223 + $0x18] sm:$0xff]
      %v274 = vld [vmem:[%s223 + $0x20] sm:$0xff]
      %v275 = vld [vmem:[%s223 + $0x28] sm:$0xff]
      %v276 = vld [vmem:[%s223 + $0x30] sm:$0xff]
      %v277 = vld [vmem:[%s223 + $0x38] sm:$0xff]
      %v278 = vld [vmem:[%s223 + $0x40] sm:$0xff]
      %v279 = vld [vmem:[%s223 + $0x48] sm:$0xff]
      %v280 = vld [vmem:[%s223 + $0x50] sm:$0xff]
      %v281 = vld [vmem:[%s223 + $0x58] sm:$0xff]
      %v282 = vld [vmem:[%s223 + $0x60] sm:$0xff]
      %v283 = vld [vmem:[%s223 + $0x68] sm:$0xff]
      %v284 = vld [vmem:[%s223 + $0x70] sm:$0xff]
      %v285 = vld [vmem:[%s223 + $0x78] sm:$0xff]
      %s286 = sshra.s32 %s253, 3
      %s287 = sand.u32 %s253, 7
      %s288 = smul.addr %s286, 4
      %s289 = scalar_lea.vmem %s1, %s288
      %v290 = vld [vmem:[%s289] sm:$0xf]
      %v291 = vld [vmem:[%s289 + $0x4] sm:$0xf]
      %v292 = vld [vmem:[%s289 + $0x8] sm:$0xf]
      %v293 = vld [vmem:[%s289 + $0xc] sm:$0xf]
      %v294 = vld [vmem:[%s289 + $0x10] sm:$0xf]
      %v295 = vld [vmem:[%s289 + $0x14] sm:$0xf]
      %v296 = vld [vmem:[%s289 + $0x18] sm:$0xf]
      %v297 = vld [vmem:[%s289 + $0x1c] sm:$0xf]
      %v298 = vld [vmem:[%s289 + $0x20] sm:$0xf]
      %v299 = vld [vmem:[%s289 + $0x24] sm:$0xf]
      %v300 = vld [vmem:[%s289 + $0x28] sm:$0xf]
      %v301 = vld [vmem:[%s289 + $0x2c] sm:$0xf]
      %v302 = vld [vmem:[%s289 + $0x30] sm:$0xf]
      %v303 = vld [vmem:[%s289 + $0x34] sm:$0xf]
      %v304 = vld [vmem:[%s289 + $0x38] sm:$0xf]
      %v305 = vld [vmem:[%s289 + $0x3c] sm:$0xf]
      %v306 = vld [vmem:[%s289 + $0x40] sm:$0xf]
      %v307 = vld [vmem:[%s289 + $0x44] sm:$0xf]
      %v308 = vld [vmem:[%s289 + $0x48] sm:$0xf]
      %v309 = vld [vmem:[%s289 + $0x4c] sm:$0xf]
      %v310 = vld [vmem:[%s289 + $0x50] sm:$0xf]
      %v311 = vld [vmem:[%s289 + $0x54] sm:$0xf]
      %v312 = vld [vmem:[%s289 + $0x58] sm:$0xf]
      %v313 = vld [vmem:[%s289 + $0x5c] sm:$0xf]
      %v314 = vld [vmem:[%s289 + $0x60] sm:$0xf]
      %v315 = vld [vmem:[%s289 + $0x64] sm:$0xf]
      %v316 = vld [vmem:[%s289 + $0x68] sm:$0xf]
      %v317 = vld [vmem:[%s289 + $0x6c] sm:$0xf]
      %v318 = vld [vmem:[%s289 + $0x70] sm:$0xf]
      %v319 = vld [vmem:[%s289 + $0x74] sm:$0xf]
      %v320 = vld [vmem:[%s289 + $0x78] sm:$0xf]
      %v321 = vld [vmem:[%s289 + $0x7c] sm:$0xf]
      %v338 = vunpack.c.l.b16 %v270
      %v339 = vunpack.c.h.b16 %v270
      %v340 = vunpack.c.l.b16 %v271
      %v341 = vunpack.c.h.b16 %v271
      %v342 = vunpack.c.l.b16 %v272
      %v343 = vunpack.c.h.b16 %v272
      %v344 = vunpack.c.l.b16 %v273
      %v345 = vunpack.c.h.b16 %v273
      %v346 = vunpack.c.l.b16 %v274
      %v347 = vunpack.c.h.b16 %v274
      %v348 = vunpack.c.l.b16 %v275
      %v349 = vunpack.c.h.b16 %v275
      %v350 = vunpack.c.l.b16 %v276
      %v351 = vunpack.c.h.b16 %v276
      %v352 = vunpack.c.l.b16 %v277
      %v353 = vunpack.c.h.b16 %v277
      %v354 = vunpack.c.l.b16 %v278
      %v355 = vunpack.c.h.b16 %v278
      %v356 = vunpack.c.l.b16 %v279
      %v357 = vunpack.c.h.b16 %v279
      %v358 = vunpack.c.l.b16 %v280
      %v359 = vunpack.c.h.b16 %v280
      %v360 = vunpack.c.l.b16 %v281
      %v361 = vunpack.c.h.b16 %v281
      %v362 = vunpack.c.l.b16 %v282
      %v363 = vunpack.c.h.b16 %v282
      %v364 = vunpack.c.l.b16 %v283
      %v365 = vunpack.c.h.b16 %v283
      %v366 = vunpack.c.l.b16 %v284
      %v367 = vunpack.c.h.b16 %v284
      %v368 = vunpack.c.l.b16 %v285
      %v369 = vunpack.c.h.b16 %v285
      %v370 = vpack.c.b16 %v340, %v338
      %v371 = vpack.c.b16 %v341, %v339
      %v372 = vpack.c.b16 %v344, %v342
      %v373 = vpack.c.b16 %v345, %v343
      %v374 = vpack.c.b16 %v348, %v346
      %v375 = vpack.c.b16 %v349, %v347
      %v376 = vpack.c.b16 %v352, %v350
      %v377 = vpack.c.b16 %v353, %v351
      %v378 = vpack.c.b16 %v356, %v354
      %v379 = vpack.c.b16 %v357, %v355
      %v380 = vpack.c.b16 %v360, %v358
      %v381 = vpack.c.b16 %v361, %v359
      %v382 = vpack.c.b16 %v364, %v362
      %v383 = vpack.c.b16 %v365, %v363
      %v384 = vpack.c.b16 %v368, %v366
      %v385 = vpack.c.b16 %v369, %v367
      %v434 = vunpack.c.l.b16 %v290
      %v435 = vunpack.c.l.b16 %v291
      %v436 = vunpack.c.l.b16 %v292
      %v437 = vunpack.c.l.b16 %v293
      %v438 = vunpack.c.l.b16 %v294
      %v439 = vunpack.c.l.b16 %v295
      %v440 = vunpack.c.l.b16 %v296
      %v441 = vunpack.c.l.b16 %v297
      %v442 = vunpack.c.l.b16 %v298
      %v443 = vunpack.c.l.b16 %v299
      %v444 = vunpack.c.l.b16 %v300
      %v445 = vunpack.c.l.b16 %v301
      %v446 = vunpack.c.l.b16 %v302
      %v447 = vunpack.c.l.b16 %v303
      %v448 = vunpack.c.l.b16 %v304
      %v449 = vunpack.c.l.b16 %v305
      %v450 = vunpack.c.l.b16 %v306
      %v451 = vunpack.c.l.b16 %v307
      %v452 = vunpack.c.l.b16 %v308
      %v453 = vunpack.c.l.b16 %v309
      %v454 = vunpack.c.l.b16 %v310
      %v455 = vunpack.c.l.b16 %v311
      %v456 = vunpack.c.l.b16 %v312
      %v457 = vunpack.c.l.b16 %v313
      %v458 = vunpack.c.l.b16 %v314
      %v459 = vunpack.c.l.b16 %v315
      %v460 = vunpack.c.l.b16 %v316
      %v461 = vunpack.c.l.b16 %v317
      %v462 = vunpack.c.l.b16 %v318
      %v463 = vunpack.c.l.b16 %v319
      %v464 = vunpack.c.l.b16 %v320
      %v465 = vunpack.c.l.b16 %v321
      %v466 = vpack.c.b16 %v435, %v434
      %v467 = vpack.c.b16 %v437, %v436
      %v468 = vpack.c.b16 %v439, %v438
      %v469 = vpack.c.b16 %v441, %v440
      %v470 = vpack.c.b16 %v443, %v442
      %v471 = vpack.c.b16 %v445, %v444
      %v472 = vpack.c.b16 %v447, %v446
      %v473 = vpack.c.b16 %v449, %v448
      %v474 = vpack.c.b16 %v451, %v450
      %v475 = vpack.c.b16 %v453, %v452
      %v476 = vpack.c.b16 %v455, %v454
      %v477 = vpack.c.b16 %v457, %v456
      %v478 = vpack.c.b16 %v459, %v458
      %v479 = vpack.c.b16 %v461, %v460
      %v480 = vpack.c.b16 %v463, %v462
      %v481 = vpack.c.b16 %v465, %v464
      %498 = vmatprep.subr.bf16.mxu0 0
      %499 = vmatpush1.bf16.msra.mxu0 %v473
      %500 = vmatprep.subr.bf16.mxu0 0
      %501 = vmatpush1.bf16.msra.mxu0 %v472
      %502 = vmatprep.subr.bf16.mxu0 0
      %503 = vmatpush1.bf16.msra.mxu0 %v471
      %504 = vmatprep.subr.bf16.mxu0 0
      %505 = vmatpush1.bf16.msra.mxu0 %v470
      %506 = vmatprep.subr.bf16.mxu0 0
      %507 = vmatpush1.bf16.msra.mxu0 %v469
      %508 = vmatprep.subr.bf16.mxu0 0
      %509 = vmatpush1.bf16.msra.mxu0 %v468
      %510 = vmatprep.subr.bf16.mxu0 0
      %511 = vmatpush1.bf16.msra.mxu0 %v467
      %512 = vmatprep.subr.bf16.mxu0 0
      %513 = vmatpush1.bf16.msra.mxu0 %v466
      %514 = vmatprep.subr.bf16.mxu0 0
      %515 = vmatpush2.bf16.msra.mxu0 %v481
      %516 = vmatprep.subr.bf16.mxu0 0
      %517 = vmatpush2.bf16.msra.mxu0 %v480
      %518 = vmatprep.subr.bf16.mxu0 0
      %519 = vmatpush2.bf16.msra.mxu0 %v479
      %520 = vmatprep.subr.bf16.mxu0 0
      %521 = vmatpush2.bf16.msra.mxu0 %v478
      %522 = vmatprep.subr.bf16.mxu0 0
      %523 = vmatpush2.bf16.msra.mxu0 %v477
      %524 = vmatprep.subr.bf16.mxu0 0
      %525 = vmatpush2.bf16.msra.mxu0 %v476
      %526 = vmatprep.subr.bf16.mxu0 0
      %527 = vmatpush2.bf16.msra.mxu0 %v475
      %528 = vmatprep.subr.bf16.mxu0 0
      %529 = vmatpush2.bf16.msra.mxu0 %v474
      %530 = vmatprep.mubr.bf16.mxu0 %v371
      %531 = vmatmul.mubr.bf16.gmra.mxu0 %v370
      %v532 = vpop.f32.mrf.mxu0
      %v533 = vadd.f32 0.0, %v532
      %v534 = vpop.f32.mrf.mxu0
      %v535 = vpop.f32.mrf.mxu0
      %v536 = vadd.f32 0.0, %v535
      %v537 = vpop.f32.mrf.mxu0
      %538 = vmatprep.mubr.bf16.mxu0 %v373
      %539 = vmatmul.mubr.bf16.gmra.mxu0 %v372
      %v540 = vpop.f32.mrf.mxu0
      %v541 = vadd.f32 0.0, %v540
      %v542 = vpop.f32.mrf.mxu0
      %v543 = vpop.f32.mrf.mxu0
      %v544 = vadd.f32 0.0, %v543
      %v545 = vpop.f32.mrf.mxu0
      %546 = vmatprep.mubr.bf16.mxu0 %v375
      %547 = vmatmul.mubr.bf16.gmra.mxu0 %v374
      %v548 = vpop.f32.mrf.mxu0
      %v549 = vadd.f32 0.0, %v548
      %v550 = vpop.f32.mrf.mxu0
      %v551 = vpop.f32.mrf.mxu0
      %v552 = vadd.f32 0.0, %v551
      %v553 = vpop.f32.mrf.mxu0
      %554 = vmatprep.mubr.bf16.mxu0 %v377
      %555 = vmatmul.mubr.bf16.gmra.mxu0 %v376
      %v556 = vpop.f32.mrf.mxu0
      %v557 = vadd.f32 0.0, %v556
      %v558 = vpop.f32.mrf.mxu0
      %v559 = vpop.f32.mrf.mxu0
      %v560 = vadd.f32 0.0, %v559
      %v561 = vpop.f32.mrf.mxu0
      %562 = vmatprep.mubr.bf16.mxu0 %v379
      %563 = vmatmul.mubr.bf16.gmra.mxu0 %v378
      %v564 = vpop.f32.mrf.mxu0
      %v565 = vadd.f32 0.0, %v564
      %v566 = vpop.f32.mrf.mxu0
      %v567 = vpop.f32.mrf.mxu0
      %v568 = vadd.f32 0.0, %v567
      %v569 = vpop.f32.mrf.mxu0
      %570 = vmatprep.mubr.bf16.mxu0 %v381
      %571 = vmatmul.mubr.bf16.gmra.mxu0 %v380
      %v572 = vpop.f32.mrf.mxu0
      %v573 = vadd.f32 0.0, %v572
      %v574 = vpop.f32.mrf.mxu0
      %v575 = vpop.f32.mrf.mxu0
      %v576 = vadd.f32 0.0, %v575
      %v577 = vpop.f32.mrf.mxu0
      %578 = vmatprep.mubr.bf16.mxu0 %v383
      %579 = vmatmul.mubr.bf16.gmra.mxu0 %v382
      %v580 = vpop.f32.mrf.mxu0
      %v581 = vadd.f32 0.0, %v580
      %v582 = vpop.f32.mrf.mxu0
      %v583 = vpop.f32.mrf.mxu0
      %v584 = vadd.f32 0.0, %v583
      %v585 = vpop.f32.mrf.mxu0
      %586 = vmatprep.mubr.bf16.mxu0 %v385
      %587 = vmatmul.mubr.bf16.gmra.mxu0 %v384
      %v588 = vpop.f32.mrf.mxu0
      %v589 = vadd.f32 0.0, %v588
      %v590 = vpop.f32.mrf.mxu0
      %v591 = vpop.f32.mrf.mxu0
      %v592 = vadd.f32 0.0, %v591
      %v593 = vpop.f32.mrf.mxu0
      %594 = vdwg.mxu0
      %v595 = vadd.f32 %v254, %v533
      %v596 = vadd.f32 %v255, %v536
      %v597 = vadd.f32 %v256, %v541
      %v598 = vadd.f32 %v257, %v544
      %v599 = vadd.f32 %v258, %v549
      %v600 = vadd.f32 %v259, %v552
      %v601 = vadd.f32 %v260, %v557
      %v602 = vadd.f32 %v261, %v560
      %v603 = vadd.f32 %v262, %v565
      %v604 = vadd.f32 %v263, %v568
      %v605 = vadd.f32 %v264, %v573
      %v606 = vadd.f32 %v265, %v576
      %v607 = vadd.f32 %v266, %v581
      %v608 = vadd.f32 %v267, %v584
      %v609 = vadd.f32 %v268, %v589
      %v610 = vadd.f32 %v269, %v592
      %611 = vst [vmem:[#allocation2] sm:$0xff] %v595
      %612 = vst [vmem:[#allocation2 + $0x8] sm:$0xff] %v596
      %613 = vst [vmem:[#allocation2 + $0x10] sm:$0xff] %v597
      %614 = vst [vmem:[#allocation2 + $0x18] sm:$0xff] %v598
      %615 = vst [vmem:[#allocation2 + $0x20] sm:$0xff] %v599
      %616 = vst [vmem:[#allocation2 + $0x28] sm:$0xff] %v600
      %617 = vst [vmem:[#allocation2 + $0x30] sm:$0xff] %v601
      %618 = vst [vmem:[#allocation2 + $0x38] sm:$0xff] %v602
      %619 = vst [vmem:[#allocation2 + $0x40] sm:$0xff] %v603
      %620 = vst [vmem:[#allocation2 + $0x48] sm:$0xff] %v604
      %621 = vst [vmem:[#allocation2 + $0x50] sm:$0xff] %v605
      %622 = vst [vmem:[#allocation2 + $0x58] sm:$0xff] %v606
      %623 = vst [vmem:[#allocation2 + $0x60] sm:$0xff] %v607
      %624 = vst [vmem:[#allocation2 + $0x68] sm:$0xff] %v608
      %625 = vst [vmem:[#allocation2 + $0x70] sm:$0xff] %v609
      %626 = vst [vmem:[#allocation2 + $0x78] sm:$0xff] %v610
      // Predicated region
      $region41: #{textgcn_forward.5} parent=35 // pred_check
        %p627 = pneg %p233
      $region42: #{textgcn_forward.5} parent=35 // pred_check_branch
        %629 = sbr.rel (%p627) target = $region44
      $region43: #{textgcn_forward.5} parent=35 // pred_region
        %v630 = vld [vmem:[#allocation2] sm:$0xff]
        %v631 = vld [vmem:[#allocation2 + $0x8] sm:$0xff]
        %v632 = vld [vmem:[#allocation2 + $0x10] sm:$0xff]
        %v633 = vld [vmem:[#allocation2 + $0x18] sm:$0xff]
        %v634 = vld [vmem:[#allocation2 + $0x20] sm:$0xff]
        %v635 = vld [vmem:[#allocation2 + $0x28] sm:$0xff]
        %v636 = vld [vmem:[#allocation2 + $0x30] sm:$0xff]
        %v637 = vld [vmem:[#allocation2 + $0x38] sm:$0xff]
        %v638 = vld [vmem:[#allocation2 + $0x40] sm:$0xff]
        %v639 = vld [vmem:[#allocation2 + $0x48] sm:$0xff]
        %v640 = vld [vmem:[#allocation2 + $0x50] sm:$0xff]
        %v641 = vld [vmem:[#allocation2 + $0x58] sm:$0xff]
        %v642 = vld [vmem:[#allocation2 + $0x60] sm:$0xff]
        %v643 = vld [vmem:[#allocation2 + $0x68] sm:$0xff]
        %v644 = vld [vmem:[#allocation2 + $0x70] sm:$0xff]
        %v645 = vld [vmem:[#allocation2 + $0x78] sm:$0xff]
        %v646 = vld [vmem:[%s2] sm:$0x1]
        %v648 = vlaneseq
        %v649 = vshrl.u32 %v648, 7
        %v650 = vsub.s32 0, %v649
        %v651 = vrot.slane %v646, %v650
        %v653 = vadd.f32 %v630, %v651
        %v654 = vadd.f32 %v631, %v651
        %v655 = vadd.f32 %v632, %v651
        %v656 = vadd.f32 %v633, %v651
        %v657 = vadd.f32 %v634, %v651
        %v658 = vadd.f32 %v635, %v651
        %v659 = vadd.f32 %v636, %v651
        %v660 = vadd.f32 %v637, %v651
        %v661 = vadd.f32 %v638, %v651
        %v662 = vadd.f32 %v639, %v651
        %v663 = vadd.f32 %v640, %v651
        %v664 = vadd.f32 %v641, %v651
        %v665 = vadd.f32 %v642, %v651
        %v666 = vadd.f32 %v643, %v651
        %v667 = vadd.f32 %v644, %v651
        %v668 = vadd.f32 %v645, %v651
        %v669 = vmax.f32 %v653, 0.0
        %v670 = vmax.f32 %v654, 0.0
        %v671 = vmax.f32 %v655, 0.0
        %v672 = vmax.f32 %v656, 0.0
        %v673 = vmax.f32 %v657, 0.0
        %v674 = vmax.f32 %v658, 0.0
        %v675 = vmax.f32 %v659, 0.0
        %v676 = vmax.f32 %v660, 0.0
        %v677 = vmax.f32 %v661, 0.0
        %v678 = vmax.f32 %v662, 0.0
        %v679 = vmax.f32 %v663, 0.0
        %v680 = vmax.f32 %v664, 0.0
        %v681 = vmax.f32 %v665, 0.0
        %v682 = vmax.f32 %v666, 0.0
        %v683 = vmax.f32 %v667, 0.0
        %v684 = vmax.f32 %v668, 0.0
        %v685 = vpack.c.bf16 %v670, %v669
        %v686 = vpack.c.bf16 %v672, %v671
        %v687 = vpack.c.bf16 %v674, %v673
        %v688 = vpack.c.bf16 %v676, %v675
        %v689 = vpack.c.bf16 %v678, %v677
        %v690 = vpack.c.bf16 %v680, %v679
        %v691 = vpack.c.bf16 %v682, %v681
        %v692 = vpack.c.bf16 %v684, %v683
        %v693 = vld [vmem:[%s3] sm:$0xf]
        %v694 = vld [vmem:[%s3 + $0x4] sm:$0xf]
        %v695 = vld [vmem:[%s3 + $0x8] sm:$0xf]
        %v696 = vld [vmem:[%s3 + $0xc] sm:$0xf]
        %v697 = vld [vmem:[%s3 + $0x10] sm:$0xf]
        %v698 = vld [vmem:[%s3 + $0x14] sm:$0xf]
        %v699 = vld [vmem:[%s3 + $0x18] sm:$0xf]
        %v700 = vld [vmem:[%s3 + $0x1c] sm:$0xf]
        %v701 = vld [vmem:[%s3 + $0x20] sm:$0xf]
        %v702 = vld [vmem:[%s3 + $0x24] sm:$0xf]
        %v703 = vld [vmem:[%s3 + $0x28] sm:$0xf]
        %v704 = vld [vmem:[%s3 + $0x2c] sm:$0xf]
        %v705 = vld [vmem:[%s3 + $0x30] sm:$0xf]
        %v706 = vld [vmem:[%s3 + $0x34] sm:$0xf]
        %v707 = vld [vmem:[%s3 + $0x38] sm:$0xf]
        %v708 = vld [vmem:[%s3 + $0x3c] sm:$0xf]
        %v725 = vunpack.c.l.b16 %v693
        %v726 = vunpack.c.l.b16 %v694
        %v727 = vunpack.c.l.b16 %v695
        %v728 = vunpack.c.l.b16 %v696
        %v729 = vunpack.c.l.b16 %v697
        %v730 = vunpack.c.l.b16 %v698
        %v731 = vunpack.c.l.b16 %v699
        %v732 = vunpack.c.l.b16 %v700
        %v733 = vunpack.c.l.b16 %v701
        %v734 = vunpack.c.l.b16 %v702
        %v735 = vunpack.c.l.b16 %v703
        %v736 = vunpack.c.l.b16 %v704
        %v737 = vunpack.c.l.b16 %v705
        %v738 = vunpack.c.l.b16 %v706
        %v739 = vunpack.c.l.b16 %v707
        %v740 = vunpack.c.l.b16 %v708
        %v741 = vpack.c.b16 %v726, %v725
        %v742 = vpack.c.b16 %v728, %v727
        %v743 = vpack.c.b16 %v730, %v729
        %v744 = vpack.c.b16 %v732, %v731
        %v745 = vpack.c.b16 %v734, %v733
        %v746 = vpack.c.b16 %v736, %v735
        %v747 = vpack.c.b16 %v738, %v737
        %v748 = vpack.c.b16 %v740, %v739
        %757 = vmatprep.subr.bf16.mxu0 0
        %758 = vmatpush1.bf16.msra.mxu0 %v748
        %759 = vmatprep.subr.bf16.mxu0 0
        %760 = vmatpush1.bf16.msra.mxu0 %v747
        %761 = vmatprep.subr.bf16.mxu0 0
        %762 = vmatpush1.bf16.msra.mxu0 %v746
        %763 = vmatprep.subr.bf16.mxu0 0
        %764 = vmatpush1.bf16.msra.mxu0 %v745
        %765 = vmatprep.subr.bf16.mxu0 0
        %766 = vmatpush1.bf16.msra.mxu0 %v744
        %767 = vmatprep.subr.bf16.mxu0 0
        %768 = vmatpush1.bf16.msra.mxu0 %v743
        %769 = vmatprep.subr.bf16.mxu0 0
        %770 = vmatpush1.bf16.msra.mxu0 %v742
        %771 = vmatprep.subr.bf16.mxu0 0
        %772 = vmatpush1.bf16.msra.mxu0 %v741
        %773 = vmatprep.subr.bf16.mxu0 0
        %774 = vmatpush2.bf16.msra.mxu0 0
        %775 = vmatprep.subr.bf16.mxu0 0
        %776 = vmatpush2.bf16.msra.mxu0 0
        %777 = vmatprep.subr.bf16.mxu0 0
        %778 = vmatpush2.bf16.msra.mxu0 0
        %779 = vmatprep.subr.bf16.mxu0 0
        %780 = vmatpush2.bf16.msra.mxu0 0
        %781 = vmatprep.subr.bf16.mxu0 0
        %782 = vmatpush2.bf16.msra.mxu0 0
        %783 = vmatprep.subr.bf16.mxu0 0
        %784 = vmatpush2.bf16.msra.mxu0 0
        %785 = vmatprep.subr.bf16.mxu0 0
        %786 = vmatpush2.bf16.msra.mxu0 0
        %787 = vmatprep.subr.bf16.mxu0 0
        %788 = vmatpush2.bf16.msra.mxu0 0
        %789 = vmatprep.mubr.bf16.mxu0 0
        %790 = vmatmul.mubr.bf16.gmra.mxu0 %v685
        %v791 = vpop.f32.mrf.mxu0
        %v792 = vadd.f32 0.0, %v791
        %v793 = vpop.f32.mrf.mxu0
        %v794 = vpop.f32.mrf.mxu0
        %v795 = vadd.f32 0.0, %v794
        %v796 = vpop.f32.mrf.mxu0
        %797 = vmatprep.mubr.bf16.mxu0 0
        %798 = vmatmul.mubr.bf16.gmra.mxu0 %v686
        %v799 = vpop.f32.mrf.mxu0
        %v800 = vadd.f32 0.0, %v799
        %v801 = vpop.f32.mrf.mxu0
        %v802 = vpop.f32.mrf.mxu0
        %v803 = vadd.f32 0.0, %v802
        %v804 = vpop.f32.mrf.mxu0
        %805 = vmatprep.mubr.bf16.mxu0 0
        %806 = vmatmul.mubr.bf16.gmra.mxu0 %v687
        %v807 = vpop.f32.mrf.mxu0
        %v808 = vadd.f32 0.0, %v807
        %v809 = vpop.f32.mrf.mxu0
        %v810 = vpop.f32.mrf.mxu0
        %v811 = vadd.f32 0.0, %v810
        %v812 = vpop.f32.mrf.mxu0
        %813 = vmatprep.mubr.bf16.mxu0 0
        %814 = vmatmul.mubr.bf16.gmra.mxu0 %v688
        %v815 = vpop.f32.mrf.mxu0
        %v816 = vadd.f32 0.0, %v815
        %v817 = vpop.f32.mrf.mxu0
        %v818 = vpop.f32.mrf.mxu0
        %v819 = vadd.f32 0.0, %v818
        %v820 = vpop.f32.mrf.mxu0
        %821 = vmatprep.mubr.bf16.mxu0 0
        %822 = vmatmul.mubr.bf16.gmra.mxu0 %v689
        %v823 = vpop.f32.mrf.mxu0
        %v824 = vadd.f32 0.0, %v823
        %v825 = vpop.f32.mrf.mxu0
        %v826 = vpop.f32.mrf.mxu0
        %v827 = vadd.f32 0.0, %v826
        %v828 = vpop.f32.mrf.mxu0
        %829 = vmatprep.mubr.bf16.mxu0 0
        %830 = vmatmul.mubr.bf16.gmra.mxu0 %v690
        %v831 = vpop.f32.mrf.mxu0
        %v832 = vadd.f32 0.0, %v831
        %v833 = vpop.f32.mrf.mxu0
        %v834 = vpop.f32.mrf.mxu0
        %v835 = vadd.f32 0.0, %v834
        %v836 = vpop.f32.mrf.mxu0
        %837 = vmatprep.mubr.bf16.mxu0 0
        %838 = vmatmul.mubr.bf16.gmra.mxu0 %v691
        %v839 = vpop.f32.mrf.mxu0
        %v840 = vadd.f32 0.0, %v839
        %v841 = vpop.f32.mrf.mxu0
        %v842 = vpop.f32.mrf.mxu0
        %v843 = vadd.f32 0.0, %v842
        %v844 = vpop.f32.mrf.mxu0
        %845 = vmatprep.mubr.bf16.mxu0 0
        %846 = vmatmul.mubr.bf16.gmra.mxu0 %v692
        %v847 = vpop.f32.mrf.mxu0
        %v848 = vadd.f32 0.0, %v847
        %v849 = vpop.f32.mrf.mxu0
        %v850 = vpop.f32.mrf.mxu0
        %v851 = vadd.f32 0.0, %v850
        %v852 = vpop.f32.mrf.mxu0
        %853 = vdwg.mxu0
        %v854 = vpack.c.bf16 %v795, %v792
        %v855 = vpack.c.bf16 %v803, %v800
        %v856 = vpack.c.bf16 %v811, %v808
        %v857 = vpack.c.bf16 %v819, %v816
        %v858 = vpack.c.bf16 %v827, %v824
        %v859 = vpack.c.bf16 %v835, %v832
        %v860 = vpack.c.bf16 %v843, %v840
        %v861 = vpack.c.bf16 %v851, %v848
        %v870 = vunpack.c.l.b16 %v854
        %v871 = vunpack.c.h.b16 %v854
        %v872 = vunpack.c.l.b16 %v855
        %v873 = vunpack.c.h.b16 %v855
        %v874 = vunpack.c.l.b16 %v856
        %v875 = vunpack.c.h.b16 %v856
        %v876 = vunpack.c.l.b16 %v857
        %v877 = vunpack.c.h.b16 %v857
        %v878 = vunpack.c.l.b16 %v858
        %v879 = vunpack.c.h.b16 %v858
        %v880 = vunpack.c.l.b16 %v859
        %v881 = vunpack.c.h.b16 %v859
        %v882 = vunpack.c.l.b16 %v860
        %v883 = vunpack.c.h.b16 %v860
        %v884 = vunpack.c.l.b16 %v861
        %v885 = vunpack.c.h.b16 %v861
        %v886 = vpack.c.b16 %v870, %v870
        %v887 = vpack.c.b16 %v871, %v871
        %v888 = vpack.c.b16 %v872, %v872
        %v889 = vpack.c.b16 %v873, %v873
        %v890 = vpack.c.b16 %v874, %v874
        %v891 = vpack.c.b16 %v875, %v875
        %v892 = vpack.c.b16 %v876, %v876
        %v893 = vpack.c.b16 %v877, %v877
        %v894 = vpack.c.b16 %v878, %v878
        %v895 = vpack.c.b16 %v879, %v879
        %v896 = vpack.c.b16 %v880, %v880
        %v897 = vpack.c.b16 %v881, %v881
        %v898 = vpack.c.b16 %v882, %v882
        %v899 = vpack.c.b16 %v883, %v883
        %v900 = vpack.c.b16 %v884, %v884
        %v901 = vpack.c.b16 %v885, %v885
        %918 = vst [vmem:[%s230] sm:$0xf] %v886
        %919 = vst [vmem:[%s230 + $0x4] sm:$0xf] %v887
        %920 = vst [vmem:[%s230 + $0x8] sm:$0xf] %v888
        %921 = vst [vmem:[%s230 + $0xc] sm:$0xf] %v889
        %922 = vst [vmem:[%s230 + $0x10] sm:$0xf] %v890
        %923 = vst [vmem:[%s230 + $0x14] sm:$0xf] %v891
        %924 = vst [vmem:[%s230 + $0x18] sm:$0xf] %v892
        %925 = vst [vmem:[%s230 + $0x1c] sm:$0xf] %v893
        %926 = vst [vmem:[%s230 + $0x20] sm:$0xf] %v894
        %927 = vst [vmem:[%s230 + $0x24] sm:$0xf] %v895
        %928 = vst [vmem:[%s230 + $0x28] sm:$0xf] %v896
        %929 = vst [vmem:[%s230 + $0x2c] sm:$0xf] %v897
        %930 = vst [vmem:[%s230 + $0x30] sm:$0xf] %v898
        %931 = vst [vmem:[%s230 + $0x34] sm:$0xf] %v899
        %932 = vst [vmem:[%s230 + $0x38] sm:$0xf] %v900
        %933 = vst [vmem:[%s230 + $0x3c] sm:$0xf] %v901
      $region44: #{textgcn_forward.5} parent=35 // pred_fallthru
        _
      %s934 = smul.u32 16, %s19
      %p935 = scmp.lt.s32.totalorder %s934, 31
      %s936 = scalar_select %p935, %s934, 31
      %s937 = smul.addr %s936, 4
      %s938 = scalar_lea.vmem %s4, %s937
      // Predicated region
      $region45: #{textgcn_forward.5} parent=35 // pred_check
        %p939 = pneg %p136
      $region46: #{textgcn_forward.5} parent=35 // pred_check_branch
        %941 = sbr.rel (%p939) target = $region48
      $region47: #{textgcn_forward.5} parent=35 // pred_region
        %s942 = smul.u32 16, %s19
      $region48: #{textgcn_forward.5} parent=35 // pred_fallthru
        _
    $region36: #{textgcn_forward.5} parent=5 // pred_fallthru
      _
    %p943 = scmp.le.s32.totalorder 2, %s10
    // Predicated region
    $region49: #{textgcn_forward.5} parent=5 // pred_check
      %p944 = pneg %p943
    $region50: #{textgcn_forward.5} parent=5 // pred_check_branch
      %946 = sbr.rel (%p944) target = $region52
    $region51: #{textgcn_forward.5} parent=5 // pred_region
      %s947 = ssub.s32 %s10, 2
      // Predicated region
      $region53: #{textgcn_forward.5} parent=51 // pred_check
        %p948 = pneg %p142
      $region54: #{textgcn_forward.5} parent=51 // pred_check_branch
        %950 = sbr.rel (%p948) target = $region56
      $region55: #{textgcn_forward.5} parent=51 // pred_region
        %s951 = smul.u32 16, %s21
        %p952 = scmp.lt.s32.totalorder %s951, 31
        %s953 = scalar_select %p952, %s951, 31
        %s954 = smul.addr %s953, 4
        %s955 = scalar_lea.vmem %s4, %s954
      $region56: #{textgcn_forward.5} parent=51 // pred_fallthru
        _
    $region52: #{textgcn_forward.5} parent=5 // pred_fallthru
      _
  $region6: #{textgcn_forward.5} parent=0 // loop_footer
    %s14 = sadd.s32 1, %s10
  $region7: #{textgcn_forward.5} parent=0 // loop_footer_branch
    %9 = sbr.rel target = $region3
  $region8: #{textgcn_forward.5} parent=0 // loop_exit
    _

// kernel: textgcn_forward.4
$region0: #{textgcn_forward.4}
  #allocation0 [shape = 'u32[]', space=smem, size = 0x4, offset = 0x4, fixed_abs, tag = 'smem constant byte address 0x4 - core index']
  #allocation1 [shape = 'u32[144,128]{1,0:T(1,128)}', space=vmem, size = 0x12000, scoped, tag = 'internal scratch']
  %s0 = inlined_call_operand.vmem [shape: bf16[256,768], index: 0, kind: input, shape index: {}]
  %s1 = inlined_call_operand.vmem [shape: bf16[768,128], index: 1, kind: input, shape index: {}]
  %s2 = inlined_call_operand.vmem [shape: bf16[256,128], index: 2, kind: output, shape index: {}]
  %s3 = sld [smem:[#allocation0]]
  $region41: #{textgcn_forward.4} parent=0
    _
  %s5 = ssub.s32 1, %s3
  %s6 = scalar_select 0, %s5, %s3
  loop: start=0, step=1, limit=4
  $region2: #{textgcn_forward.4} parent=0 // loop_pre_header
    _
  $region3: #{textgcn_forward.4} parent=0 // loop_header
    %s8 = sphi 0, %s12
    %p9 = scmp.ge.s32.totalorder %s8, 4
    %s18 = sphi 0, %s20
    %s21 = sphi 0, %s18
    %s22 = sphi 0, %s21
    %s38 = sphi 0, %s22
    %s42 = sphi 0, %s42
    %s44 = sphi 0, %s42
    %s45 = sphi 0, %s44
    %s59 = sphi 0, %s45
    %s65 = sphi 0, %s67
    %s68 = sphi 0, %s65
    %s69 = sphi 0, %s68
    %s85 = sphi 0, %s69
  $region4: #{textgcn_forward.4} parent=0 // loop_header_branch
    %11 = sbr.rel (%p9) target = $region8
  $region5: #{textgcn_forward.4} parent=0 // loop_body
    %s13 = ssub.s32 %s8, 1
    %s14 = ssub.s32 %s8, 2
    %s15 = sadd.s32 %s8, 1
    %s16 = ssub.s32 %s8, %s15
    %p17 = scmp.eq.s32.totalorder %s16, 0
    %s19 = sadd.s32 %s18, 1
    %s20 = scalar_select %p17, %s18, %s19
    %p23 = pneg %p17
    %p24 = scmp.eq.s32.totalorder %s8, 1
    %p25 = por %p23, %p24
    %p26 = scmp.ne.s32.totalorder %s18, %s21
    %p27 = scmp.eq.s32.totalorder %s8, 0
    %p28 = por %p26, %p27
    %p29 = scmp.ne.s32.totalorder %s18, %s21
    %p30 = scmp.eq.s32.totalorder %s13, 1
    %p31 = por %p29, %p30
    %p32 = scmp.ne.s32.totalorder %s21, %s22
    %p33 = scmp.eq.s32.totalorder %s13, 0
    %p34 = por %p32, %p33
    %p35 = scmp.ne.s32.totalorder %s21, %s22
    %p36 = scmp.eq.s32.totalorder %s14, 1
    %p37 = por %p35, %p36
    %p39 = scmp.ne.s32.totalorder %s22, %s38
    %p40 = scmp.eq.s32.totalorder %s14, 0
    %p41 = por %p39, %p40
    %s43 = sadd.s32 %s42, 1
    %p46 = scmp.eq.s32.totalorder %s8, 1
    %p47 = scmp.ne.s32.totalorder %s42, %s44
    %p48 = scmp.eq.s32.totalorder %s8, 0
    %p49 = por %p47, %p48
    %p50 = scmp.ne.s32.totalorder %s42, %s44
    %p51 = scmp.eq.s32.totalorder %s13, 1
    %p52 = por %p50, %p51
    %p53 = scmp.ne.s32.totalorder %s44, %s45
    %p54 = scmp.eq.s32.totalorder %s13, 0
    %p55 = por %p53, %p54
    %p56 = scmp.ne.s32.totalorder %s44, %s45
    %p57 = scmp.eq.s32.totalorder %s14, 1
    %p58 = por %p56, %p57
    %p60 = scmp.ne.s32.totalorder %s45, %s59
    %p61 = scmp.eq.s32.totalorder %s14, 0
    %p62 = por %p60, %p61
    %s63 = ssub.s32 %s8, %s15
    %p64 = scmp.eq.s32.totalorder %s63, 0
    %s66 = sadd.s32 %s65, 1
    %s67 = scalar_select %p64, %s65, %s66
    %p70 = pneg %p64
    %p71 = scmp.eq.s32.totalorder %s8, 1
    %p72 = por %p70, %p71
    %p73 = scmp.ne.s32.totalorder %s65, %s68
    %p74 = scmp.eq.s32.totalorder %s8, 0
    %p75 = por %p73, %p74
    %p76 = scmp.ne.s32.totalorder %s65, %s68
    %p77 = scmp.eq.s32.totalorder %s13, 1
    %p78 = por %p76, %p77
    %p79 = scmp.ne.s32.totalorder %s68, %s69
    %p80 = scmp.eq.s32.totalorder %s13, 0
    %p81 = por %p79, %p80
    %p82 = scmp.ne.s32.totalorder %s68, %s69
    %p83 = scmp.eq.s32.totalorder %s14, 1
    %p84 = por %p82, %p83
    %p86 = scmp.ne.s32.totalorder %s69, %s85
    %p87 = scmp.eq.s32.totalorder %s14, 0
    %p88 = por %p86, %p87
    %p89 = scmp.le.s32.totalorder 1, %s8
    %p90 = scmp.lt.s32.totalorder %s8, 3
    %p91 = pnand %p89, %p90
    %p92 = pneg %p91
    // Predicated region
    $region9: #{textgcn_forward.4} parent=5 // pred_check
      _
    $region10: #{textgcn_forward.4} parent=5 // pred_check_branch
      %94 = sbr.rel (%p91) target = $region12
    $region11: #{textgcn_forward.4} parent=5 // pred_region
      %s95 = ssub.s32 %s8, 1
      // Predicated region
      $region13: #{textgcn_forward.4} parent=11 // pred_check
        %p96 = pneg %p55
      $region14: #{textgcn_forward.4} parent=11 // pred_check_branch
        %98 = sbr.rel (%p96) target = $region16
      $region15: #{textgcn_forward.4} parent=11 // pred_region
        _
      $region16: #{textgcn_forward.4} parent=11 // pred_fallthru
        _
    $region12: #{textgcn_forward.4} parent=5 // pred_fallthru
      _
    %p99 = scmp.lt.s32.totalorder %s8, 2
    // Predicated region
    $region17: #{textgcn_forward.4} parent=5 // pred_check
      %p100 = pneg %p99
    $region18: #{textgcn_forward.4} parent=5 // pred_check_branch
      %102 = sbr.rel (%p100) target = $region20
    $region19: #{textgcn_forward.4} parent=5 // pred_region
      // Predicated region
      $region21: #{textgcn_forward.4} parent=19 // pred_check
        %p103 = pneg %p28
      $region22: #{textgcn_forward.4} parent=19 // pred_check_branch
        %105 = sbr.rel (%p103) target = $region24
      $region23: #{textgcn_forward.4} parent=19 // pred_region
        %s106 = smul.u32 16, %s8
        %p107 = scmp.lt.s32.totalorder %s106, 31
        %s108 = scalar_select %p107, %s106, 31
        %s109 = smul.addr %s108, 6
        %s110 = smul.addr %s109, 4
        %s111 = scalar_lea.vmem %s0, %s110
        %s112 = smul.u32 16, %s8
      $region24: #{textgcn_forward.4} parent=19 // pred_fallthru
        _
    $region20: #{textgcn_forward.4} parent=5 // pred_fallthru
      _
    %p113 = scmp.le.s32.totalorder 1, %s8
    %p114 = scmp.lt.s32.totalorder %s8, 3
    %p115 = pnand %p113, %p114
    %p116 = pneg %p115
    // Predicated region
    $region25: #{textgcn_forward.4} parent=5 // pred_check
      _
    $region26: #{textgcn_forward.4} parent=5 // pred_check_branch
      %118 = sbr.rel (%p115) target = $region28
    $region27: #{textgcn_forward.4} parent=5 // pred_region
      %s119 = ssub.s32 %s8, 1
      %s120 = smul.u32 16, %s13
      %p121 = scmp.lt.s32.totalorder %s120, 31
      %s122 = scalar_select %p121, %s120, 31
      %s123 = smul.addr %s122, 6
      %s124 = smul.addr %s123, 4
      %s125 = scalar_lea.vmem %s0, %s124
      %p126 = pneg %p34
      %p127 = pneg %p31
      %p128 = pneg %p55
      %p129 = pneg %p52
      %p130 = pneg %p81
      %p131 = pneg %p78
      %s132 = smul.u32 16, %s13
      %p133 = scmp.lt.s32.totalorder %s132, 31
      %s134 = scalar_select %p133, %s132, 31
      %s135 = smul.addr %s134, 4
      %s136 = scalar_lea.vmem %s2, %s135
      %s137 = smul.u32 16, %s13
      %p138 = scmp.lt.s32.totalorder %s137, 31
      %s139 = scalar_select %p138, %s137, 31
      %s140 = smul.addr %s139, 6
      %s141 = smul.addr %s140, 4
      %s142 = scalar_lea.vmem %s0, %s141
      %s143 = smul.u32 16, %s13
      %s144 = smul.u32 16, %s13
      %p145 = scmp.lt.s32.totalorder %s144, 31
      %s146 = scalar_select %p145, %s144, 31
      %s147 = smul.addr %s146, 4
      %s148 = scalar_lea.vmem %s2, %s147
      %s149 = smul.u32 16, %s13
      %v151 = vld [vmem:[%s142] sm:$0xff]
      %v152 = vld [vmem:[%s142 + $0x8] sm:$0xff]
      %v153 = vld [vmem:[%s142 + $0x10] sm:$0xff]
      %v154 = vld [vmem:[%s142 + $0x18] sm:$0xff]
      %v155 = vld [vmem:[%s142 + $0x20] sm:$0xff]
      %v156 = vld [vmem:[%s142 + $0x28] sm:$0xff]
      %v157 = vld [vmem:[%s142 + $0x30] sm:$0xff]
      %v158 = vld [vmem:[%s142 + $0x38] sm:$0xff]
      %v159 = vld [vmem:[%s142 + $0x40] sm:$0xff]
      %v160 = vld [vmem:[%s142 + $0x48] sm:$0xff]
      %v161 = vld [vmem:[%s142 + $0x50] sm:$0xff]
      %v162 = vld [vmem:[%s142 + $0x58] sm:$0xff]
      %v163 = vld [vmem:[%s142 + $0x60] sm:$0xff]
      %v164 = vld [vmem:[%s142 + $0x68] sm:$0xff]
      %v165 = vld [vmem:[%s142 + $0x70] sm:$0xff]
      %v166 = vld [vmem:[%s142 + $0x78] sm:$0xff]
      %v167 = vld [vmem:[%s142 + $0x80] sm:$0xff]
      %v168 = vld [vmem:[%s142 + $0x88] sm:$0xff]
      %v169 = vld [vmem:[%s142 + $0x90] sm:$0xff]
      %v170 = vld [vmem:[%s142 + $0x98] sm:$0xff]
      %v171 = vld [vmem:[%s142 + $0xa0] sm:$0xff]
      %v172 = vld [vmem:[%s142 + $0xa8] sm:$0xff]
      %v173 = vld [vmem:[%s142 + $0xb0] sm:$0xff]
      %v174 = vld [vmem:[%s142 + $0xb8] sm:$0xff]
      %v175 = vld [vmem:[%s142 + $0xc0] sm:$0xff]
      %v176 = vld [vmem:[%s142 + $0xc8] sm:$0xff]
      %v177 = vld [vmem:[%s142 + $0xd0] sm:$0xff]
      %v178 = vld [vmem:[%s142 + $0xd8] sm:$0xff]
      %v179 = vld [vmem:[%s142 + $0xe0] sm:$0xff]
      %v180 = vld [vmem:[%s142 + $0xe8] sm:$0xff]
      %v181 = vld [vmem:[%s142 + $0xf0] sm:$0xff]
      %v182 = vld [vmem:[%s142 + $0xf8] sm:$0xff]
      %v183 = vld [vmem:[%s142 + $0x100] sm:$0xff]
      %v184 = vld [vmem:[%s142 + $0x108] sm:$0xff]
      %v185 = vld [vmem:[%s142 + $0x110] sm:$0xff]
      %v186 = vld [vmem:[%s142 + $0x118] sm:$0xff]
      %v187 = vld [vmem:[%s142 + $0x120] sm:$0xff]
      %v188 = vld [vmem:[%s142 + $0x128] sm:$0xff]
      %v189 = vld [vmem:[%s142 + $0x130] sm:$0xff]
      %v190 = vld [vmem:[%s142 + $0x138] sm:$0xff]
      %v191 = vld [vmem:[%s142 + $0x140] sm:$0xff]
      %v192 = vld [vmem:[%s142 + $0x148] sm:$0xff]
      %v193 = vld [vmem:[%s142 + $0x150] sm:$0xff]
      %v194 = vld [vmem:[%s142 + $0x158] sm:$0xff]
      %v195 = vld [vmem:[%s142 + $0x160] sm:$0xff]
      %v196 = vld [vmem:[%s142 + $0x168] sm:$0xff]
      %v197 = vld [vmem:[%s142 + $0x170] sm:$0xff]
      %v198 = vld [vmem:[%s142 + $0x178] sm:$0xff]
      %v199 = vld [vmem:[%s1] sm:$0xf]
      %v200 = vld [vmem:[%s1 + $0x4] sm:$0xf]
      %v201 = vld [vmem:[%s1 + $0x8] sm:$0xf]
      %v202 = vld [vmem:[%s1 + $0xc] sm:$0xf]
      %v203 = vld [vmem:[%s1 + $0x10] sm:$0xf]
      %v204 = vld [vmem:[%s1 + $0x14] sm:$0xf]
      %v205 = vld [vmem:[%s1 + $0x18] sm:$0xf]
      %v206 = vld [vmem:[%s1 + $0x1c] sm:$0xf]
      %v207 = vld [vmem:[%s1 + $0x20] sm:$0xf]
      %v208 = vld [vmem:[%s1 + $0x24] sm:$0xf]
      %v209 = vld [vmem:[%s1 + $0x28] sm:$0xf]
      %v210 = vld [vmem:[%s1 + $0x2c] sm:$0xf]
      %v211 = vld [vmem:[%s1 + $0x30] sm:$0xf]
      %v212 = vld [vmem:[%s1 + $0x34] sm:$0xf]
      %v213 = vld [vmem:[%s1 + $0x38] sm:$0xf]
      %v214 = vld [vmem:[%s1 + $0x3c] sm:$0xf]
      %v215 = vld [vmem:[%s1 + $0x40] sm:$0xf]
      %v216 = vld [vmem:[%s1 + $0x44] sm:$0xf]
      %v217 = vld [vmem:[%s1 + $0x48] sm:$0xf]
      %v218 = vld [vmem:[%s1 + $0x4c] sm:$0xf]
      %v219 = vld [vmem:[%s1 + $0x50] sm:$0xf]
      %v220 = vld [vmem:[%s1 + $0x54] sm:$0xf]
      %v221 = vld [vmem:[%s1 + $0x58] sm:$0xf]
      %v222 = vld [vmem:[%s1 + $0x5c] sm:$0xf]
      %v223 = vld [vmem:[%s1 + $0x60] sm:$0xf]
      %v224 = vld [vmem:[%s1 + $0x64] sm:$0xf]
      %v225 = vld [vmem:[%s1 + $0x68] sm:$0xf]
      %v226 = vld [vmem:[%s1 + $0x6c] sm:$0xf]
      %v227 = vld [vmem:[%s1 + $0x70] sm:$0xf]
      %v228 = vld [vmem:[%s1 + $0x74] sm:$0xf]
      %v229 = vld [vmem:[%s1 + $0x78] sm:$0xf]
      %v230 = vld [vmem:[%s1 + $0x7c] sm:$0xf]
      %v231 = vld [vmem:[%s1 + $0x80] sm:$0xf]
      %v232 = vld [vmem:[%s1 + $0x84] sm:$0xf]
      %v233 = vld [vmem:[%s1 + $0x88] sm:$0xf]
      %v234 = vld [vmem:[%s1 + $0x8c] sm:$0xf]
      %v235 = vld [vmem:[%s1 + $0x90] sm:$0xf]
      %v236 = vld [vmem:[%s1 + $0x94] sm:$0xf]
      %v237 = vld [vmem:[%s1 + $0x98] sm:$0xf]
      %v238 = vld [vmem:[%s1 + $0x9c] sm:$0xf]
      %v239 = vld [vmem:[%s1 + $0xa0] sm:$0xf]
      %v240 = vld [vmem:[%s1 + $0xa4] sm:$0xf]
      %v241 = vld [vmem:[%s1 + $0xa8] sm:$0xf]
      %v242 = vld [vmem:[%s1 + $0xac] sm:$0xf]
      %v243 = vld [vmem:[%s1 + $0xb0] sm:$0xf]
      %v244 = vld [vmem:[%s1 + $0xb4] sm:$0xf]
      %v245 = vld [vmem:[%s1 + $0xb8] sm:$0xf]
      %v246 = vld [vmem:[%s1 + $0xbc] sm:$0xf]
      %v247 = vld [vmem:[%s1 + $0xc0] sm:$0xf]
      %v248 = vld [vmem:[%s1 + $0xc4] sm:$0xf]
      %v249 = vld [vmem:[%s1 + $0xc8] sm:$0xf]
      %v250 = vld [vmem:[%s1 + $0xcc] sm:$0xf]
      %v251 = vld [vmem:[%s1 + $0xd0] sm:$0xf]
      %v252 = vld [vmem:[%s1 + $0xd4] sm:$0xf]
      %v253 = vld [vmem:[%s1 + $0xd8] sm:$0xf]
      %v254 = vld [vmem:[%s1 + $0xdc] sm:$0xf]
      %v255 = vld [vmem:[%s1 + $0xe0] sm:$0xf]
      %v256 = vld [vmem:[%s1 + $0xe4] sm:$0xf]
      %v257 = vld [vmem:[%s1 + $0xe8] sm:$0xf]
      %v258 = vld [vmem:[%s1 + $0xec] sm:$0xf]
      %v259 = vld [vmem:[%s1 + $0xf0] sm:$0xf]
      %v260 = vld [vmem:[%s1 + $0xf4] sm:$0xf]
      %v261 = vld [vmem:[%s1 + $0xf8] sm:$0xf]
      %v262 = vld [vmem:[%s1 + $0xfc] sm:$0xf]
      %v263 = vld [vmem:[%s1 + $0x100] sm:$0xf]
      %v264 = vld [vmem:[%s1 + $0x104] sm:$0xf]
      %v265 = vld [vmem:[%s1 + $0x108] sm:$0xf]
      %v266 = vld [vmem:[%s1 + $0x10c] sm:$0xf]
      %v267 = vld [vmem:[%s1 + $0x110] sm:$0xf]
      %v268 = vld [vmem:[%s1 + $0x114] sm:$0xf]
      %v269 = vld [vmem:[%s1 + $0x118] sm:$0xf]
      %v270 = vld [vmem:[%s1 + $0x11c] sm:$0xf]
      %v271 = vld [vmem:[%s1 + $0x120] sm:$0xf]
      %v272 = vld [vmem:[%s1 + $0x124] sm:$0xf]
      %v273 = vld [vmem:[%s1 + $0x128] sm:$0xf]
      %v274 = vld [vmem:[%s1 + $0x12c] sm:$0xf]
      %v275 = vld [vmem:[%s1 + $0x130] sm:$0xf]
      %v276 = vld [vmem:[%s1 + $0x134] sm:$0xf]
      %v277 = vld [vmem:[%s1 + $0x138] sm:$0xf]
      %v278 = vld [vmem:[%s1 + $0x13c] sm:$0xf]
      %v279 = vld [vmem:[%s1 + $0x140] sm:$0xf]
      %v280 = vld [vmem:[%s1 + $0x144] sm:$0xf]
      %v281 = vld [vmem:[%s1 + $0x148] sm:$0xf]
      %v282 = vld [vmem:[%s1 + $0x14c] sm:$0xf]
      %v283 = vld [vmem:[%s1 + $0x150] sm:$0xf]
      %v284 = vld [vmem:[%s1 + $0x154] sm:$0xf]
      %v285 = vld [vmem:[%s1 + $0x158] sm:$0xf]
      %v286 = vld [vmem:[%s1 + $0x15c] sm:$0xf]
      %v287 = vld [vmem:[%s1 + $0x160] sm:$0xf]
      %v288 = vld [vmem:[%s1 + $0x164] sm:$0xf]
      %v289 = vld [vmem:[%s1 + $0x168] sm:$0xf]
      %v290 = vld [vmem:[%s1 + $0x16c] sm:$0xf]
      %v291 = vld [vmem:[%s1 + $0x170] sm:$0xf]
      %v292 = vld [vmem:[%s1 + $0x174] sm:$0xf]
      %v293 = vld [vmem:[%s1 + $0x178] sm:$0xf]
      %v294 = vld [vmem:[%s1 + $0x17c] sm:$0xf]
      %v343 = vunpack.c.l.b16 %v151
      %v344 = vunpack.c.h.b16 %v151
      %v345 = vunpack.c.l.b16 %v152
      %v346 = vunpack.c.h.b16 %v152
      %v347 = vunpack.c.l.b16 %v153
      %v348 = vunpack.c.h.b16 %v153
      %v349 = vunpack.c.l.b16 %v154
      %v350 = vunpack.c.h.b16 %v154
      %v351 = vunpack.c.l.b16 %v155
      %v352 = vunpack.c.h.b16 %v155
      %v353 = vunpack.c.l.b16 %v156
      %v354 = vunpack.c.h.b16 %v156
      %v355 = vunpack.c.l.b16 %v157
      %v356 = vunpack.c.h.b16 %v157
      %v357 = vunpack.c.l.b16 %v158
      %v358 = vunpack.c.h.b16 %v158
      %v359 = vunpack.c.l.b16 %v159
      %v360 = vunpack.c.h.b16 %v159
      %v361 = vunpack.c.l.b16 %v160
      %v362 = vunpack.c.h.b16 %v160
      %v363 = vunpack.c.l.b16 %v161
      %v364 = vunpack.c.h.b16 %v161
      %v365 = vunpack.c.l.b16 %v162
      %v366 = vunpack.c.h.b16 %v162
      %v367 = vunpack.c.l.b16 %v163
      %v368 = vunpack.c.h.b16 %v163
      %v369 = vunpack.c.l.b16 %v164
      %v370 = vunpack.c.h.b16 %v164
      %v371 = vunpack.c.l.b16 %v165
      %v372 = vunpack.c.h.b16 %v165
      %v373 = vunpack.c.l.b16 %v166
      %v374 = vunpack.c.h.b16 %v166
      %v375 = vunpack.c.l.b16 %v167
      %v376 = vunpack.c.h.b16 %v167
      %v377 = vunpack.c.l.b16 %v168
      %v378 = vunpack.c.h.b16 %v168
      %v379 = vunpack.c.l.b16 %v169
      %v380 = vunpack.c.h.b16 %v169
      %v381 = vunpack.c.l.b16 %v170
      %v382 = vunpack.c.h.b16 %v170
      %v383 = vunpack.c.l.b16 %v171
      %v384 = vunpack.c.h.b16 %v171
      %v385 = vunpack.c.l.b16 %v172
      %v386 = vunpack.c.h.b16 %v172
      %v387 = vunpack.c.l.b16 %v173
      %v388 = vunpack.c.h.b16 %v173
      %v389 = vunpack.c.l.b16 %v174
      %v390 = vunpack.c.h.b16 %v174
      %v391 = vunpack.c.l.b16 %v175
      %v392 = vunpack.c.h.b16 %v175
      %v393 = vunpack.c.l.b16 %v176
      %v394 = vunpack.c.h.b16 %v176
      %v395 = vunpack.c.l.b16 %v177
      %v396 = vunpack.c.h.b16 %v177
      %v397 = vunpack.c.l.b16 %v178
      %v398 = vunpack.c.h.b16 %v178
      %v399 = vunpack.c.l.b16 %v179
      %v400 = vunpack.c.h.b16 %v179
      %v401 = vunpack.c.l.b16 %v180
      %v402 = vunpack.c.h.b16 %v180
      %v403 = vunpack.c.l.b16 %v181
      %v404 = vunpack.c.h.b16 %v181
      %v405 = vunpack.c.l.b16 %v182
      %v406 = vunpack.c.h.b16 %v182
      %v407 = vunpack.c.l.b16 %v183
      %v408 = vunpack.c.h.b16 %v183
      %v409 = vunpack.c.l.b16 %v184
      %v410 = vunpack.c.h.b16 %v184
      %v411 = vunpack.c.l.b16 %v185
      %v412 = vunpack.c.h.b16 %v185
      %v413 = vunpack.c.l.b16 %v186
      %v414 = vunpack.c.h.b16 %v186
      %v415 = vunpack.c.l.b16 %v187
      %v416 = vunpack.c.h.b16 %v187
      %v417 = vunpack.c.l.b16 %v188
      %v418 = vunpack.c.h.b16 %v188
      %v419 = vunpack.c.l.b16 %v189
      %v420 = vunpack.c.h.b16 %v189
      %v421 = vunpack.c.l.b16 %v190
      %v422 = vunpack.c.h.b16 %v190
      %v423 = vunpack.c.l.b16 %v191
      %v424 = vunpack.c.h.b16 %v191
      %v425 = vunpack.c.l.b16 %v192
      %v426 = vunpack.c.h.b16 %v192
      %v427 = vunpack.c.l.b16 %v193
      %v428 = vunpack.c.h.b16 %v193
      %v429 = vunpack.c.l.b16 %v194
      %v430 = vunpack.c.h.b16 %v194
      %v431 = vunpack.c.l.b16 %v195
      %v432 = vunpack.c.h.b16 %v195
      %v433 = vunpack.c.l.b16 %v196
      %v434 = vunpack.c.h.b16 %v196
      %v435 = vunpack.c.l.b16 %v197
      %v436 = vunpack.c.h.b16 %v197
      %v437 = vunpack.c.l.b16 %v198
      %v438 = vunpack.c.h.b16 %v198
      %v439 = vpack.c.b16 %v349, %v343
      %v440 = vpack.c.b16 %v350, %v344
      %v441 = vpack.c.b16 %v351, %v345
      %v442 = vpack.c.b16 %v352, %v346
      %v443 = vpack.c.b16 %v353, %v347
      %v444 = vpack.c.b16 %v354, %v348
      %v445 = vpack.c.b16 %v361, %v355
      %v446 = vpack.c.b16 %v362, %v356
      %v447 = vpack.c.b16 %v363, %v357
      %v448 = vpack.c.b16 %v364, %v358
      %v449 = vpack.c.b16 %v365, %v359
      %v450 = vpack.c.b16 %v366, %v360
      %v451 = vpack.c.b16 %v373, %v367
      %v452 = vpack.c.b16 %v374, %v368
      %v453 = vpack.c.b16 %v375, %v369
      %v454 = vpack.c.b16 %v376, %v370
      %v455 = vpack.c.b16 %v377, %v371
      %v456 = vpack.c.b16 %v378, %v372
      %v457 = vpack.c.b16 %v385, %v379
      %v458 = vpack.c.b16 %v386, %v380
      %v459 = vpack.c.b16 %v387, %v381
      %v460 = vpack.c.b16 %v388, %v382
      %v461 = vpack.c.b16 %v389, %v383
      %v462 = vpack.c.b16 %v390, %v384
      %v463 = vpack.c.b16 %v397, %v391
      %v464 = vpack.c.b16 %v398, %v392
      %v465 = vpack.c.b16 %v399, %v393
      %v466 = vpack.c.b16 %v400, %v394
      %v467 = vpack.c.b16 %v401, %v395
      %v468 = vpack.c.b16 %v402, %v396
      %v469 = vpack.c.b16 %v409, %v403
      %v470 = vpack.c.b16 %v410, %v404
      %v471 = vpack.c.b16 %v411, %v405
      %v472 = vpack.c.b16 %v412, %v406
      %v473 = vpack.c.b16 %v413, %v407
      %v474 = vpack.c.b16 %v414, %v408
      %v475 = vpack.c.b16 %v421, %v415
      %v476 = vpack.c.b16 %v422, %v416
      %v477 = vpack.c.b16 %v423, %v417
      %v478 = vpack.c.b16 %v424, %v418
      %v479 = vpack.c.b16 %v425, %v419
      %v480 = vpack.c.b16 %v426, %v420
      %v481 = vpack.c.b16 %v433, %v427
      %v482 = vpack.c.b16 %v434, %v428
      %v483 = vpack.c.b16 %v435, %v429
      %v484 = vpack.c.b16 %v436, %v430
      %v485 = vpack.c.b16 %v437, %v431
      %v486 = vpack.c.b16 %v438, %v432
      %v631 = vunpack.c.l.b16 %v199
      %v632 = vunpack.c.l.b16 %v200
      %v633 = vunpack.c.l.b16 %v201
      %v634 = vunpack.c.l.b16 %v202
      %v635 = vunpack.c.l.b16 %v203
      %v636 = vunpack.c.l.b16 %v204
      %v637 = vunpack.c.l.b16 %v205
      %v638 = vunpack.c.l.b16 %v206
      %v639 = vunpack.c.l.b16 %v207
      %v640 = vunpack.c.l.b16 %v208
      %v641 = vunpack.c.l.b16 %v209
      %v642 = vunpack.c.l.b16 %v210
      %v643 = vunpack.c.l.b16 %v211
      %v644 = vunpack.c.l.b16 %v212
      %v645 = vunpack.c.l.b16 %v213
      %v646 = vunpack.c.l.b16 %v214
      %v647 = vunpack.c.l.b16 %v215
      %v648 = vunpack.c.l.b16 %v216
      %v649 = vunpack.c.l.b16 %v217
      %v650 = vunpack.c.l.b16 %v218
      %v651 = vunpack.c.l.b16 %v219
      %v652 = vunpack.c.l.b16 %v220
      %v653 = vunpack.c.l.b16 %v221
      %v654 = vunpack.c.l.b16 %v222
      %v655 = vunpack.c.l.b16 %v223
      %v656 = vunpack.c.l.b16 %v224
      %v657 = vunpack.c.l.b16 %v225
      %v658 = vunpack.c.l.b16 %v226
      %v659 = vunpack.c.l.b16 %v227
      %v660 = vunpack.c.l.b16 %v228
      %v661 = vunpack.c.l.b16 %v229
      %v662 = vunpack.c.l.b16 %v230
      %v663 = vunpack.c.l.b16 %v231
      %v664 = vunpack.c.l.b16 %v232
      %v665 = vunpack.c.l.b16 %v233
      %v666 = vunpack.c.l.b16 %v234
      %v667 = vunpack.c.l.b16 %v235
      %v668 = vunpack.c.l.b16 %v236
      %v669 = vunpack.c.l.b16 %v237
      %v670 = vunpack.c.l.b16 %v238
      %v671 = vunpack.c.l.b16 %v239
      %v672 = vunpack.c.l.b16 %v240
      %v673 = vunpack.c.l.b16 %v241
      %v674 = vunpack.c.l.b16 %v242
      %v675 = vunpack.c.l.b16 %v243
      %v676 = vunpack.c.l.b16 %v244
      %v677 = vunpack.c.l.b16 %v245
      %v678 = vunpack.c.l.b16 %v246
      %v679 = vunpack.c.l.b16 %v247
      %v680 = vunpack.c.l.b16 %v248
      %v681 = vunpack.c.l.b16 %v249
      %v682 = vunpack.c.l.b16 %v250
      %v683 = vunpack.c.l.b16 %v251
      %v684 = vunpack.c.l.b16 %v252
      %v685 = vunpack.c.l.b16 %v253
      %v686 = vunpack.c.l.b16 %v254
      %v687 = vunpack.c.l.b16 %v255
      %v688 = vunpack.c.l.b16 %v256
      %v689 = vunpack.c.l.b16 %v257
      %v690 = vunpack.c.l.b16 %v258
      %v691 = vunpack.c.l.b16 %v259
      %v692 = vunpack.c.l.b16 %v260
      %v693 = vunpack.c.l.b16 %v261
      %v694 = vunpack.c.l.b16 %v262
      %v695 = vunpack.c.l.b16 %v263
      %v696 = vunpack.c.l.b16 %v264
      %v697 = vunpack.c.l.b16 %v265
      %v698 = vunpack.c.l.b16 %v266
      %v699 = vunpack.c.l.b16 %v267
      %v700 = vunpack.c.l.b16 %v268
      %v701 = vunpack.c.l.b16 %v269
      %v702 = vunpack.c.l.b16 %v270
      %v703 = vunpack.c.l.b16 %v271
      %v704 = vunpack.c.l.b16 %v272
      %v705 = vunpack.c.l.b16 %v273
      %v706 = vunpack.c.l.b16 %v274
      %v707 = vunpack.c.l.b16 %v275
      %v708 = vunpack.c.l.b16 %v276
      %v709 = vunpack.c.l.b16 %v277
      %v710 = vunpack.c.l.b16 %v278
      %v711 = vunpack.c.l.b16 %v279
      %v712 = vunpack.c.l.b16 %v280
      %v713 = vunpack.c.l.b16 %v281
      %v714 = vunpack.c.l.b16 %v282
      %v715 = vunpack.c.l.b16 %v283
      %v716 = vunpack.c.l.b16 %v284
      %v717 = vunpack.c.l.b16 %v285
      %v718 = vunpack.c.l.b16 %v286
      %v719 = vunpack.c.l.b16 %v287
      %v720 = vunpack.c.l.b16 %v288
      %v721 = vunpack.c.l.b16 %v289
      %v722 = vunpack.c.l.b16 %v290
      %v723 = vunpack.c.l.b16 %v291
      %v724 = vunpack.c.l.b16 %v292
      %v725 = vunpack.c.l.b16 %v293
      %v726 = vunpack.c.l.b16 %v294
      %v727 = vpack.c.b16 %v632, %v631
      %v728 = vpack.c.b16 %v634, %v633
      %v729 = vpack.c.b16 %v636, %v635
      %v730 = vpack.c.b16 %v638, %v637
      %v731 = vpack.c.b16 %v640, %v639
      %v732 = vpack.c.b16 %v642, %v641
      %v733 = vpack.c.b16 %v644, %v643
      %v734 = vpack.c.b16 %v646, %v645
      %v735 = vpack.c.b16 %v648, %v647
      %v736 = vpack.c.b16 %v650, %v649
      %v737 = vpack.c.b16 %v652, %v651
      %v738 = vpack.c.b16 %v654, %v653
      %v739 = vpack.c.b16 %v656, %v655
      %v740 = vpack.c.b16 %v658, %v657
      %v741 = vpack.c.b16 %v660, %v659
      %v742 = vpack.c.b16 %v662, %v661
      %v743 = vpack.c.b16 %v664, %v663
      %v744 = vpack.c.b16 %v666, %v665
      %v745 = vpack.c.b16 %v668, %v667
      %v746 = vpack.c.b16 %v670, %v669
      %v747 = vpack.c.b16 %v672, %v671
      %v748 = vpack.c.b16 %v674, %v673
      %v749 = vpack.c.b16 %v676, %v675
      %v750 = vpack.c.b16 %v678, %v677
      %v751 = vpack.c.b16 %v680, %v679
      %v752 = vpack.c.b16 %v682, %v681
      %v753 = vpack.c.b16 %v684, %v683
      %v754 = vpack.c.b16 %v686, %v685
      %v755 = vpack.c.b16 %v688, %v687
      %v756 = vpack.c.b16 %v690, %v689
      %v757 = vpack.c.b16 %v692, %v691
      %v758 = vpack.c.b16 %v694, %v693
      %v759 = vpack.c.b16 %v696, %v695
      %v760 = vpack.c.b16 %v698, %v697
      %v761 = vpack.c.b16 %v700, %v699
      %v762 = vpack.c.b16 %v702, %v701
      %v763 = vpack.c.b16 %v704, %v703
      %v764 = vpack.c.b16 %v706, %v705
      %v765 = vpack.c.b16 %v708, %v707
      %v766 = vpack.c.b16 %v710, %v709
      %v767 = vpack.c.b16 %v712, %v711
      %v768 = vpack.c.b16 %v714, %v713
      %v769 = vpack.c.b16 %v716, %v715
      %v770 = vpack.c.b16 %v718, %v717
      %v771 = vpack.c.b16 %v720, %v719
      %v772 = vpack.c.b16 %v722, %v721
      %v773 = vpack.c.b16 %v724, %v723
      %v774 = vpack.c.b16 %v726, %v725
      %823 = vmatprep.subr.bf16.mxu0 0
      %824 = vmatpush1.bf16.msra.mxu0 %v734
      %825 = vmatprep.subr.bf16.mxu0 0
      %826 = vmatpush1.bf16.msra.mxu0 %v733
      %827 = vmatprep.subr.bf16.mxu0 0
      %828 = vmatpush1.bf16.msra.mxu0 %v732
      %829 = vmatprep.subr.bf16.mxu0 0
      %830 = vmatpush1.bf16.msra.mxu0 %v731
      %831 = vmatprep.subr.bf16.mxu0 0
      %832 = vmatpush1.bf16.msra.mxu0 %v730
      %833 = vmatprep.subr.bf16.mxu0 0
      %834 = vmatpush1.bf16.msra.mxu0 %v729
      %835 = vmatprep.subr.bf16.mxu0 0
      %836 = vmatpush1.bf16.msra.mxu0 %v728
      %837 = vmatprep.subr.bf16.mxu0 0
      %838 = vmatpush1.bf16.msra.mxu0 %v727
      %839 = vmatprep.subr.bf16.mxu0 0
      %840 = vmatpush2.bf16.msra.mxu0 %v742
      %841 = vmatprep.subr.bf16.mxu0 0
      %842 = vmatpush2.bf16.msra.mxu0 %v741
      %843 = vmatprep.subr.bf16.mxu0 0
      %844 = vmatpush2.bf16.msra.mxu0 %v740
      %845 = vmatprep.subr.bf16.mxu0 0
      %846 = vmatpush2.bf16.msra.mxu0 %v739
      %847 = vmatprep.subr.bf16.mxu0 0
      %848 = vmatpush2.bf16.msra.mxu0 %v738
      %849 = vmatprep.subr.bf16.mxu0 0
      %850 = vmatpush2.bf16.msra.mxu0 %v737
      %851 = vmatprep.subr.bf16.mxu0 0
      %852 = vmatpush2.bf16.msra.mxu0 %v736
      %853 = vmatprep.subr.bf16.mxu0 0
      %854 = vmatpush2.bf16.msra.mxu0 %v735
      %855 = vmatprep.mubr.bf16.mxu0 %v440
      %856 = vmatmul.mubr.bf16.gmra.mxu0 %v439
      %v857 = vpop.f32.mrf.mxu0
      %v858 = vadd.f32 0.0, %v857
      %v859 = vpop.f32.mrf.mxu0
      %v860 = vpop.f32.mrf.mxu0
      %v861 = vadd.f32 0.0, %v860
      %v862 = vpop.f32.mrf.mxu0
      %863 = vmatprep.mubr.bf16.mxu0 %v446
      %864 = vmatmul.mubr.bf16.gmra.mxu0 %v445
      %v865 = vpop.f32.mrf.mxu0
      %v866 = vadd.f32 0.0, %v865
      %v867 = vpop.f32.mrf.mxu0
      %v868 = vpop.f32.mrf.mxu0
      %v869 = vadd.f32 0.0, %v868
      %v870 = vpop.f32.mrf.mxu0
      %871 = vmatprep.mubr.bf16.mxu0 %v452
      %872 = vmatmul.mubr.bf16.gmra.mxu0 %v451
      %v873 = vpop.f32.mrf.mxu0
      %v874 = vadd.f32 0.0, %v873
      %v875 = vpop.f32.mrf.mxu0
      %v876 = vpop.f32.mrf.mxu0
      %v877 = vadd.f32 0.0, %v876
      %v878 = vpop.f32.mrf.mxu0
      %879 = vmatprep.mubr.bf16.mxu0 %v458
      %880 = vmatmul.mubr.bf16.gmra.mxu0 %v457
      %v881 = vpop.f32.mrf.mxu0
      %v882 = vadd.f32 0.0, %v881
      %v883 = vpop.f32.mrf.mxu0
      %v884 = vpop.f32.mrf.mxu0
      %v885 = vadd.f32 0.0, %v884
      %v886 = vpop.f32.mrf.mxu0
      %887 = vmatprep.mubr.bf16.mxu0 %v464
      %888 = vmatmul.mubr.bf16.gmra.mxu0 %v463
      %v889 = vpop.f32.mrf.mxu0
      %v890 = vadd.f32 0.0, %v889
      %v891 = vpop.f32.mrf.mxu0
      %v892 = vpop.f32.mrf.mxu0
      %v893 = vadd.f32 0.0, %v892
      %v894 = vpop.f32.mrf.mxu0
      %895 = vmatprep.mubr.bf16.mxu0 %v470
      %896 = vmatmul.mubr.bf16.gmra.mxu0 %v469
      %v897 = vpop.f32.mrf.mxu0
      %v898 = vadd.f32 0.0, %v897
      %v899 = vpop.f32.mrf.mxu0
      %v900 = vpop.f32.mrf.mxu0
      %v901 = vadd.f32 0.0, %v900
      %v902 = vpop.f32.mrf.mxu0
      %903 = vmatprep.mubr.bf16.mxu0 %v476
      %904 = vmatmul.mubr.bf16.gmra.mxu0 %v475
      %v905 = vpop.f32.mrf.mxu0
      %v906 = vadd.f32 0.0, %v905
      %v907 = vpop.f32.mrf.mxu0
      %v908 = vpop.f32.mrf.mxu0
      %v909 = vadd.f32 0.0, %v908
      %v910 = vpop.f32.mrf.mxu0
      %911 = vmatprep.mubr.bf16.mxu0 %v482
      %912 = vmatmul.mubr.bf16.gmra.mxu0 %v481
      %v913 = vpop.f32.mrf.mxu0
      %v914 = vadd.f32 0.0, %v913
      %v915 = vpop.f32.mrf.mxu0
      %v916 = vpop.f32.mrf.mxu0
      %v917 = vadd.f32 0.0, %v916
      %v918 = vpop.f32.mrf.mxu0
      %919 = vdwg.mxu0
      %920 = vmatprep.subr.bf16.mxu0 0
      %921 = vmatpush1.bf16.msra.mxu0 %v750
      %922 = vmatprep.subr.bf16.mxu0 0
      %923 = vmatpush1.bf16.msra.mxu0 %v749
      %924 = vmatprep.subr.bf16.mxu0 0
      %925 = vmatpush1.bf16.msra.mxu0 %v748
      %926 = vmatprep.subr.bf16.mxu0 0
      %927 = vmatpush1.bf16.msra.mxu0 %v747
      %928 = vmatprep.subr.bf16.mxu0 0
      %929 = vmatpush1.bf16.msra.mxu0 %v746
      %930 = vmatprep.subr.bf16.mxu0 0
      %931 = vmatpush1.bf16.msra.mxu0 %v745
      %932 = vmatprep.subr.bf16.mxu0 0
      %933 = vmatpush1.bf16.msra.mxu0 %v744
      %934 = vmatprep.subr.bf16.mxu0 0
      %935 = vmatpush1.bf16.msra.mxu0 %v743
      %936 = vmatprep.subr.bf16.mxu0 0
      %937 = vmatpush2.bf16.msra.mxu0 %v758
      %938 = vmatprep.subr.bf16.mxu0 0
      %939 = vmatpush2.bf16.msra.mxu0 %v757
      %940 = vmatprep.subr.bf16.mxu0 0
      %941 = vmatpush2.bf16.msra.mxu0 %v756
      %942 = vmatprep.subr.bf16.mxu0 0
      %943 = vmatpush2.bf16.msra.mxu0 %v755
      %944 = vmatprep.subr.bf16.mxu0 0
      %945 = vmatpush2.bf16.msra.mxu0 %v754
      %946 = vmatprep.subr.bf16.mxu0 0
      %947 = vmatpush2.bf16.msra.mxu0 %v753
      %948 = vmatprep.subr.bf16.mxu0 0
      %949 = vmatpush2.bf16.msra.mxu0 %v752
      %950 = vmatprep.subr.bf16.mxu0 0
      %951 = vmatpush2.bf16.msra.mxu0 %v751
      %952 = vmatprep.mubr.bf16.mxu0 %v442
      %953 = vmatmul.mubr.bf16.gmra.mxu0 %v441
      %v954 = vpop.f32.mrf.mxu0
      %v955 = vadd.f32 %v858, %v954
      %v956 = vpop.f32.mrf.mxu0
      %v957 = vpop.f32.mrf.mxu0
      %v958 = vadd.f32 %v861, %v957
      %v959 = vpop.f32.mrf.mxu0
      %960 = vmatprep.mubr.bf16.mxu0 %v448
      %961 = vmatmul.mubr.bf16.gmra.mxu0 %v447
      %v962 = vpop.f32.mrf.mxu0
      %v963 = vadd.f32 %v866, %v962
      %v964 = vpop.f32.mrf.mxu0
      %v965 = vpop.f32.mrf.mxu0
      %v966 = vadd.f32 %v869, %v965
      %v967 = vpop.f32.mrf.mxu0
      %968 = vmatprep.mubr.bf16.mxu0 %v454
      %969 = vmatmul.mubr.bf16.gmra.mxu0 %v453
      %v970 = vpop.f32.mrf.mxu0
      %v971 = vadd.f32 %v874, %v970
      %v972 = vpop.f32.mrf.mxu0
      %v973 = vpop.f32.mrf.mxu0
      %v974 = vadd.f32 %v877, %v973
      %v975 = vpop.f32.mrf.mxu0
      %976 = vmatprep.mubr.bf16.mxu0 %v460
      %977 = vmatmul.mubr.bf16.gmra.mxu0 %v459
      %v978 = vpop.f32.mrf.mxu0
      %v979 = vadd.f32 %v882, %v978
      %v980 = vpop.f32.mrf.mxu0
      %v981 = vpop.f32.mrf.mxu0
      %v982 = vadd.f32 %v885, %v981
      %v983 = vpop.f32.mrf.mxu0
      %984 = vmatprep.mubr.bf16.mxu0 %v466
      %985 = vmatmul.mubr.bf16.gmra.mxu0 %v465
      %v986 = vpop.f32.mrf.mxu0
      %v987 = vadd.f32 %v890, %v986
      %v988 = vpop.f32.mrf.mxu0
      %v989 = vpop.f32.mrf.mxu0
      %v990 = vadd.f32 %v893, %v989
      %v991 = vpop.f32.mrf.mxu0
      %992 = vmatprep.mubr.bf16.mxu0 %v472
      %993 = vmatmul.mubr.bf16.gmra.mxu0 %v471
      %v994 = vpop.f32.mrf.mxu0
      %v995 = vadd.f32 %v898, %v994
      %v996 = vpop.f32.mrf.mxu0
      %v997 = vpop.f32.mrf.mxu0
      %v998 = vadd.f32 %v901, %v997
      %v999 = vpop.f32.mrf.mxu0
      %1000 = vmatprep.mubr.bf16.mxu0 %v478
      %1001 = vmatmul.mubr.bf16.gmra.mxu0 %v477
      %v1002 = vpop.f32.mrf.mxu0
      %v1003 = vadd.f32 %v906, %v1002
      %v1004 = vpop.f32.mrf.mxu0
      %v1005 = vpop.f32.mrf.mxu0
      %v1006 = vadd.f32 %v909, %v1005
      %v1007 = vpop.f32.mrf.mxu0
      %1008 = vmatprep.mubr.bf16.mxu0 %v484
      %1009 = vmatmul.mubr.bf16.gmra.mxu0 %v483
      %v1010 = vpop.f32.mrf.mxu0
      %v1011 = vadd.f32 %v914, %v1010
      %v1012 = vpop.f32.mrf.mxu0
      %v1013 = vpop.f32.mrf.mxu0
      %v1014 = vadd.f32 %v917, %v1013
      %v1015 = vpop.f32.mrf.mxu0
      %1016 = vdwg.mxu0
      %1017 = vmatprep.subr.bf16.mxu0 0
      %1018 = vmatpush1.bf16.msra.mxu0 %v766
      %1019 = vmatprep.subr.bf16.mxu0 0
      %1020 = vmatpush1.bf16.msra.mxu0 %v765
      %1021 = vmatprep.subr.bf16.mxu0 0
      %1022 = vmatpush1.bf16.msra.mxu0 %v764
      %1023 = vmatprep.subr.bf16.mxu0 0
      %1024 = vmatpush1.bf16.msra.mxu0 %v763
      %1025 = vmatprep.subr.bf16.mxu0 0
      %1026 = vmatpush1.bf16.msra.mxu0 %v762
      %1027 = vmatprep.subr.bf16.mxu0 0
      %1028 = vmatpush1.bf16.msra.mxu0 %v761
      %1029 = vmatprep.subr.bf16.mxu0 0
      %1030 = vmatpush1.bf16.msra.mxu0 %v760
      %1031 = vmatprep.subr.bf16.mxu0 0
      %1032 = vmatpush1.bf16.msra.mxu0 %v759
      %1033 = vmatprep.subr.bf16.mxu0 0
      %1034 = vmatpush2.bf16.msra.mxu0 %v774
      %1035 = vmatprep.subr.bf16.mxu0 0
      %1036 = vmatpush2.bf16.msra.mxu0 %v773
      %1037 = vmatprep.subr.bf16.mxu0 0
      %1038 = vmatpush2.bf16.msra.mxu0 %v772
      %1039 = vmatprep.subr.bf16.mxu0 0
      %1040 = vmatpush2.bf16.msra.mxu0 %v771
      %1041 = vmatprep.subr.bf16.mxu0 0
      %1042 = vmatpush2.bf16.msra.mxu0 %v770
      %1043 = vmatprep.subr.bf16.mxu0 0
      %1044 = vmatpush2.bf16.msra.mxu0 %v769
      %1045 = vmatprep.subr.bf16.mxu0 0
      %1046 = vmatpush2.bf16.msra.mxu0 %v768
      %1047 = vmatprep.subr.bf16.mxu0 0
      %1048 = vmatpush2.bf16.msra.mxu0 %v767
      %1049 = vmatprep.mubr.bf16.mxu0 %v444
      %1050 = vmatmul.mubr.bf16.gmra.mxu0 %v443
      %v1051 = vpop.f32.mrf.mxu0
      %v1052 = vadd.f32 %v955, %v1051
      %v1053 = vpop.f32.mrf.mxu0
      %v1054 = vpop.f32.mrf.mxu0
      %v1055 = vadd.f32 %v958, %v1054
      %v1056 = vpop.f32.mrf.mxu0
      %1057 = vmatprep.mubr.bf16.mxu0 %v450
      %1058 = vmatmul.mubr.bf16.gmra.mxu0 %v449
      %v1059 = vpop.f32.mrf.mxu0
      %v1060 = vadd.f32 %v963, %v1059
      %v1061 = vpop.f32.mrf.mxu0
      %v1062 = vpop.f32.mrf.mxu0
      %v1063 = vadd.f32 %v966, %v1062
      %v1064 = vpop.f32.mrf.mxu0
      %1065 = vmatprep.mubr.bf16.mxu0 %v456
      %1066 = vmatmul.mubr.bf16.gmra.mxu0 %v455
      %v1067 = vpop.f32.mrf.mxu0
      %v1068 = vadd.f32 %v971, %v1067
      %v1069 = vpop.f32.mrf.mxu0
      %v1070 = vpop.f32.mrf.mxu0
      %v1071 = vadd.f32 %v974, %v1070
      %v1072 = vpop.f32.mrf.mxu0
      %1073 = vmatprep.mubr.bf16.mxu0 %v462
      %1074 = vmatmul.mubr.bf16.gmra.mxu0 %v461
      %v1075 = vpop.f32.mrf.mxu0
      %v1076 = vadd.f32 %v979, %v1075
      %v1077 = vpop.f32.mrf.mxu0
      %v1078 = vpop.f32.mrf.mxu0
      %v1079 = vadd.f32 %v982, %v1078
      %v1080 = vpop.f32.mrf.mxu0
      %1081 = vmatprep.mubr.bf16.mxu0 %v468
      %1082 = vmatmul.mubr.bf16.gmra.mxu0 %v467
      %v1083 = vpop.f32.mrf.mxu0
      %v1084 = vadd.f32 %v987, %v1083
      %v1085 = vpop.f32.mrf.mxu0
      %v1086 = vpop.f32.mrf.mxu0
      %v1087 = vadd.f32 %v990, %v1086
      %v1088 = vpop.f32.mrf.mxu0
      %1089 = vmatprep.mubr.bf16.mxu0 %v474
      %1090 = vmatmul.mubr.bf16.gmra.mxu0 %v473
      %v1091 = vpop.f32.mrf.mxu0
      %v1092 = vadd.f32 %v995, %v1091
      %v1093 = vpop.f32.mrf.mxu0
      %v1094 = vpop.f32.mrf.mxu0
      %v1095 = vadd.f32 %v998, %v1094
      %v1096 = vpop.f32.mrf.mxu0
      %1097 = vmatprep.mubr.bf16.mxu0 %v480
      %1098 = vmatmul.mubr.bf16.gmra.mxu0 %v479
      %v1099 = vpop.f32.mrf.mxu0
      %v1100 = vadd.f32 %v1003, %v1099
      %v1101 = vpop.f32.mrf.mxu0
      %v1102 = vpop.f32.mrf.mxu0
      %v1103 = vadd.f32 %v1006, %v1102
      %v1104 = vpop.f32.mrf.mxu0
      %1105 = vmatprep.mubr.bf16.mxu0 %v486
      %1106 = vmatmul.mubr.bf16.gmra.mxu0 %v485
      %v1107 = vpop.f32.mrf.mxu0
      %v1108 = vadd.f32 %v1011, %v1107
      %v1109 = vpop.f32.mrf.mxu0
      %v1110 = vpop.f32.mrf.mxu0
      %v1111 = vadd.f32 %v1014, %v1110
      %v1112 = vpop.f32.mrf.mxu0
      %1113 = vdwg.mxu0
      %v1114 = vpack.c.bf16 %v1055, %v1052
      %v1115 = vpack.c.bf16 %v1063, %v1060
      %v1116 = vpack.c.bf16 %v1071, %v1068
      %v1117 = vpack.c.bf16 %v1079, %v1076
      %v1118 = vpack.c.bf16 %v1087, %v1084
      %v1119 = vpack.c.bf16 %v1095, %v1092
      %v1120 = vpack.c.bf16 %v1103, %v1100
      %v1121 = vpack.c.bf16 %v1111, %v1108
      %v1130 = vunpack.c.l.b16 %v1114
      %v1131 = vunpack.c.h.b16 %v1114
      %v1132 = vunpack.c.l.b16 %v1115
      %v1133 = vunpack.c.h.b16 %v1115
      %v1134 = vunpack.c.l.b16 %v1116
      %v1135 = vunpack.c.h.b16 %v1116
      %v1136 = vunpack.c.l.b16 %v1117
      %v1137 = vunpack.c.h.b16 %v1117
      %v1138 = vunpack.c.l.b16 %v1118
      %v1139 = vunpack.c.h.b16 %v1118
      %v1140 = vunpack.c.l.b16 %v1119
      %v1141 = vunpack.c.h.b16 %v1119
      %v1142 = vunpack.c.l.b16 %v1120
      %v1143 = vunpack.c.h.b16 %v1120
      %v1144 = vunpack.c.l.b16 %v1121
      %v1145 = vunpack.c.h.b16 %v1121
      %v1146 = vpack.c.b16 %v1130, %v1130
      %v1147 = vpack.c.b16 %v1131, %v1131
      %v1148 = vpack.c.b16 %v1132, %v1132
      %v1149 = vpack.c.b16 %v1133, %v1133
      %v1150 = vpack.c.b16 %v1134, %v1134
      %v1151 = vpack.c.b16 %v1135, %v1135
      %v1152 = vpack.c.b16 %v1136, %v1136
      %v1153 = vpack.c.b16 %v1137, %v1137
      %v1154 = vpack.c.b16 %v1138, %v1138
      %v1155 = vpack.c.b16 %v1139, %v1139
      %v1156 = vpack.c.b16 %v1140, %v1140
      %v1157 = vpack.c.b16 %v1141, %v1141
      %v1158 = vpack.c.b16 %v1142, %v1142
      %v1159 = vpack.c.b16 %v1143, %v1143
      %v1160 = vpack.c.b16 %v1144, %v1144
      %v1161 = vpack.c.b16 %v1145, %v1145
      %1178 = vst [vmem:[%s148] sm:$0xf] %v1146
      %1179 = vst [vmem:[%s148 + $0x4] sm:$0xf] %v1147
      %1180 = vst [vmem:[%s148 + $0x8] sm:$0xf] %v1148
      %1181 = vst [vmem:[%s148 + $0xc] sm:$0xf] %v1149
      %1182 = vst [vmem:[%s148 + $0x10] sm:$0xf] %v1150
      %1183 = vst [vmem:[%s148 + $0x14] sm:$0xf] %v1151
      %1184 = vst [vmem:[%s148 + $0x18] sm:$0xf] %v1152
      %1185 = vst [vmem:[%s148 + $0x1c] sm:$0xf] %v1153
      %1186 = vst [vmem:[%s148 + $0x20] sm:$0xf] %v1154
      %1187 = vst [vmem:[%s148 + $0x24] sm:$0xf] %v1155
      %1188 = vst [vmem:[%s148 + $0x28] sm:$0xf] %v1156
      %1189 = vst [vmem:[%s148 + $0x2c] sm:$0xf] %v1157
      %1190 = vst [vmem:[%s148 + $0x30] sm:$0xf] %v1158
      %1191 = vst [vmem:[%s148 + $0x34] sm:$0xf] %v1159
      %1192 = vst [vmem:[%s148 + $0x38] sm:$0xf] %v1160
      %1193 = vst [vmem:[%s148 + $0x3c] sm:$0xf] %v1161
      %s1194 = smul.u32 16, %s13
      %p1195 = scmp.lt.s32.totalorder %s1194, 31
      %s1196 = scalar_select %p1195, %s1194, 31
      %s1197 = smul.addr %s1196, 4
      %s1198 = scalar_lea.vmem %s2, %s1197
      // Predicated region
      $region29: #{textgcn_forward.4} parent=27 // pred_check
        %p1199 = pneg %p78
      $region30: #{textgcn_forward.4} parent=27 // pred_check_branch
        %1201 = sbr.rel (%p1199) target = $region32
      $region31: #{textgcn_forward.4} parent=27 // pred_region
        %s1202 = smul.u32 16, %s13
      $region32: #{textgcn_forward.4} parent=27 // pred_fallthru
        _
    $region28: #{textgcn_forward.4} parent=5 // pred_fallthru
      _
    %p1203 = scmp.le.s32.totalorder 2, %s8
    // Predicated region
    $region33: #{textgcn_forward.4} parent=5 // pred_check
      %p1204 = pneg %p1203
    $region34: #{textgcn_forward.4} parent=5 // pred_check_branch
      %1206 = sbr.rel (%p1204) target = $region36
    $region35: #{textgcn_forward.4} parent=5 // pred_region
      %s1207 = ssub.s32 %s8, 2
      // Predicated region
      $region37: #{textgcn_forward.4} parent=35 // pred_check
        %p1208 = pneg %p84
      $region38: #{textgcn_forward.4} parent=35 // pred_check_branch
        %1210 = sbr.rel (%p1208) target = $region40
      $region39: #{textgcn_forward.4} parent=35 // pred_region
        %s1211 = smul.u32 16, %s14
        %p1212 = scmp.lt.s32.totalorder %s1211, 31
        %s1213 = scalar_select %p1212, %s1211, 31
        %s1214 = smul.addr %s1213, 4
        %s1215 = scalar_lea.vmem %s2, %s1214
      $region40: #{textgcn_forward.4} parent=35 // pred_fallthru
        _
    $region36: #{textgcn_forward.4} parent=5 // pred_fallthru
      _
  $region6: #{textgcn_forward.4} parent=0 // loop_footer
    %s12 = sadd.s32 1, %s8
  $region7: #{textgcn_forward.4} parent=0 // loop_footer_branch
    %7 = sbr.rel target = $region3
  $region8: #{textgcn_forward.4} parent=0 // loop_exit
    _

</llo_original>
